<compile_context>
chip_gen: v7x
topology: tpu7x:2x2x1
jax: 0.10.0
libtpu: 0.0.40
codegen_flags: <defaults>
</compile_context>

<pallas_src>
import functools

import jax
import jax.numpy as jnp
import numpy as np
from jax.experimental import pallas as pl
from jax.experimental.pallas import tpu as pltpu


def decoder_step_kernel(emb_ref, hid_ref, enc_ref, attw_ref, attvb_ref,
                        wih0_ref, whh_ref, grub_ref, *rest):
    """One decode step: Bahdanau attention + multi-layer GRU + one fc_out tile.

    Grid: a single axis over lane-dense output-vocab tiles.  The attention +
    GRU state is computed once (grid step 0) and stashed in VMEM scratch;
    every grid step then runs one (B, fc_in) x (fc_in, TO) MXU matmul.
    """
    if len(rest) == 6:       # n_layers > 1: deep-layer GRU input weights passed
        wihd_ref, fcw_ref, fcb_ref, pred_ref, hidout_ref, fcin_ref = rest
    else:                    # n_layers == 1: no dummy operands are passed
        wihd_ref = None
        fcw_ref, fcb_ref, pred_ref, hidout_ref, fcin_ref = rest

    n_layers, batch, hid = hid_ref.shape
    n_rows, de2 = enc_ref.shape
    src_len = n_rows // batch
    f32 = jnp.float32
    cdt = fcin_ref.dtype                 # matmul-operand dtype (bf16 by default)

    @pl.when(pl.program_id(0) == 0)
    def _attention_and_gru():
        emb = emb_ref[...]                                     # (B, E)      cdt
        enc = enc_ref[...]                                     # (S*B, 2De)  cdt
        h_top = hid_ref[n_layers - 1]                          # (B, H)      f32

        # ---------------- Bahdanau attention, (S, B)-structured ----------------
        # energy = tanh(cat(hidden_rep, enc) @ W.T + b) as a split matmul:
        # hidden is projected once per batch row and broadcast along S.
        h_part = (jnp.dot(h_top.astype(cdt), attw_ref[:hid, :],
                          preferred_element_type=f32)
                  + attvb_ref[0:1, :])                         # (B, H)
        e_rows = jnp.dot(enc, attw_ref[hid:, :],
                         preferred_element_type=f32)           # (S*B, H)
        energy = jnp.tanh(e_rows.reshape(src_len, batch, hid)
                          + h_part[None, :, :])                # (S, B, H)

        # scores = energy @ v as a VPU multiply + lane reduce.
        scores = jnp.sum(energy * attvb_ref[1:2, :][None, :, :],
                         axis=-1, keepdims=True)               # (S, B, 1)

        # Per-batch softmax over S: plain axis-0 reductions (no selector matmuls).
        m = jnp.max(scores, axis=0, keepdims=True)             # (1, B, 1)
        ex = jnp.exp(scores - m)                               # (S, B, 1)
        den = jnp.sum(ex, axis=0, keepdims=True)               # (1, B, 1)
        attn = ex * pl.reciprocal(den, approx=True)            # (S, B, 1)

        # weighted[b, :] = sum_s a[s, b] * enc[s, b, :]   (VPU mul + axis-0 reduce)
        enc3 = enc.astype(f32).reshape(src_len, batch, de2)    # (S, B, 2De) f32
        weighted = jnp.sum(attn * enc3, axis=0)                # (B, 2De)    f32

        # ---------------- GRU (one time step, all layers) ----------------
        w_c = weighted.astype(cdt)
        x = jnp.concatenate([emb, w_c], axis=1)                # (B, E + 2De)
        layer_out = None
        for l in range(n_layers):
            h_prev = hid_ref[l]                                # (B, H) f32
            if l == 0:
                gi = jnp.dot(x, wih0_ref[...], preferred_element_type=f32)
            else:
                gi = jnp.dot(layer_out.astype(cdt), wihd_ref[l - 1],
                             preferred_element_type=f32)
            gi = gi + grub_ref[2 * l:2 * l + 1, :]             # + b_ih[l]
            gh = (jnp.dot(h_prev.astype(cdt), whh_ref[l],
                          preferred_element_type=f32)
                  + grub_ref[2 * l + 1:2 * l + 2, :])          # + b_hh[l]
            r = jax.nn.sigmoid(gi[:, :hid] + gh[:, :hid])
            z = jax.nn.sigmoid(gi[:, hid:2 * hid] + gh[:, hid:2 * hid])
            n = jnp.tanh(gi[:, 2 * hid:] + r * gh[:, 2 * hid:])
            layer_out = (1.0 - z) * n + z * h_prev
            hidout_ref[l, :, :] = layer_out.astype(hidout_ref.dtype)

        # fc_out input = cat(output, weighted, embedded): packed once into VMEM
        # scratch and reused by every output-vocab tile.
        fcin_ref[...] = jnp.concatenate([layer_out.astype(cdt), w_c, emb], axis=1)

    # ------------- fc_out: one lane-dense vocab tile per grid step -------------
    pred = (jnp.dot(fcin_ref[...], fcw_ref[...], preferred_element_type=f32)
            + fcb_ref[...])
    pred_ref[...] = pred.astype(pred_ref.dtype)


def pack_params(params, weight_dtype=jnp.bfloat16):
    """One-time weight packing (hoisted out of the per-decode-step path)."""
    n_layers = len(params["gru_w_hh"])
    hid = params["gru_w_hh"][0].shape[1]
    packed = {
        "embedding": params["embedding"].astype(weight_dtype),           # (V, E)
        "attn_w": jnp.asarray(params["attn_w"].T, weight_dtype),         # (H+2De, H)
        "attn_vb": jnp.stack([params["attn_b"],
                              params["v_w"][0]]).astype(jnp.float32),    # (2, H)
        "gru_wih0": jnp.asarray(params["gru_w_ih"][0].T, weight_dtype),  # (E+2De, 3H)
        "gru_whh": jnp.stack([w.T for w in params["gru_w_hh"]]
                             ).astype(weight_dtype),                     # (L, H, 3H)
        "gru_b": jnp.stack([b for l in range(n_layers)
                            for b in (params["gru_b_ih"][l],
                                      params["gru_b_hh"][l])]
                           ).astype(jnp.float32),                        # (2L, 3H)
        "fc_w": jnp.asarray(params["fc_w"].T, weight_dtype),             # (H+2De+E, O)
        "fc_b": params["fc_b"].reshape(1, -1).astype(jnp.float32),       # (1, O)
    }
    if n_layers > 1:
        packed["gru_wihd"] = jnp.stack(
            [params["gru_w_ih"][l].T for l in range(1, n_layers)]
        ).astype(weight_dtype)                                           # (L-1, H, 3H)
    del hid
    return packed


def decoder_step(tokens, hidden, encoder_outputs, packed, *, block_o=128):
    """tokens (B,) int32; hidden (L,B,H) f32; encoder_outputs (S,B,2De) f32."""
    n_layers, batch, hid = hidden.shape
    src_len, _, de2 = encoder_outputs.shape
    emb_dim = packed["embedding"].shape[1]
    fc_in, out_dim = packed["fc_w"].shape
    w_dtype = packed["fc_w"].dtype

    if out_dim % block_o != 0:
        block_o = out_dim
    n_tiles = out_dim // block_o

    # Embedding lookup; dropout is identity at inference.
    # TODO(synk): embedding gather + training-mode dropout RNG stay in the XLA
    # wrapper (no clean per-row gather / RNG dropout worth a kernel at this size).
    emb = jnp.take(packed["embedding"], tokens, axis=0)                # (B, E)
    # Free row-major flatten of the torch-layout encoder tensor; cast to the
    # matmul dtype so DMA bytes are halved.
    enc_flat = encoder_outputs.reshape(src_len * batch, de2).astype(w_dtype)

    def _full(a):
        nd = a.ndim
        return pl.BlockSpec(a.shape, lambda j, _nd=nd: (0,) * _nd)

    args = [emb, hidden, enc_flat,
            packed["attn_w"], packed["attn_vb"],
            packed["gru_wih0"], packed["gru_whh"], packed["gru_b"]]
    in_specs = [_full(a) for a in args]
    if n_layers > 1:
        args.append(packed["gru_wihd"])
        in_specs.append(_full(packed["gru_wihd"]))
    args += [packed["fc_w"], packed["fc_b"]]
    in_specs += [pl.BlockSpec((fc_in, block_o), lambda j: (0, j)),
                 pl.BlockSpec((1, block_o), lambda j: (0, j))]

    out_shape = (jax.ShapeDtypeStruct((batch, out_dim), jnp.float32),
                 jax.ShapeDtypeStruct((n_layers, batch, hid), jnp.float32))
    out_specs = (pl.BlockSpec((batch, block_o), lambda j: (0, j)),
                 pl.BlockSpec((n_layers, batch, hid), lambda j: (0, 0, 0)))

    pred, hidden_new = pl.pallas_call(
        decoder_step_kernel,
        grid=(n_tiles,),
        in_specs=in_specs,
        out_specs=out_specs,
        out_shape=out_shape,
        scratch_shapes=[pltpu.VMEM((batch, fc_in), w_dtype)],
        compiler_params=pltpu.CompilerParams(
            # Attention/GRU state is computed once at tile 0 and carried in VMEM
            # scratch, so this axis must stay "arbitrary".  For v7x's 2 cores
            # one would recompute the tiny state per tile and mark it "parallel".
            dimension_semantics=("arbitrary",),
        ),
    )(*args)
    return pred, hidden_new


def decoder_reference(tokens, hidden, encoder_outputs, params):
    """Pure-JAX (f32) reproduction of the PyTorch Decoder.forward (inference)."""
    n_layers, batch, hid = hidden.shape
    src_len, _, de2 = encoder_outputs.shape
    emb = params["embedding"][tokens]                                   # (B, E)

    h_top = hidden[-1]                                                  # (B, H)
    enc_p = jnp.transpose(encoder_outputs, (1, 0, 2))                   # (B, S, 2De)
    h_rep = jnp.repeat(h_top[:, None, :], src_len, axis=1)              # (B, S, H)
    energy = jnp.tanh(jnp.concatenate([h_rep, enc_p], axis=2) @ params["attn_w"].T
                      + params["attn_b"])
    scores = (energy @ params["v_w"].T)[..., 0]                         # (B, S)
    a = jax.nn.softmax(scores, axis=1)
    weighted = jnp.einsum("bs,bsd->bd", a, enc_p)                       # (B, 2De)

    inp = jnp.concatenate([emb, weighted], axis=1)
    hs = []
    for l in range(n_layers):
        w_ih, w_hh = params["gru_w_ih"][l], params["gru_w_hh"][l]
        b_ih, b_hh = params["gru_b_ih"][l], params["gru_b_hh"][l]
        h_prev = hidden[l]
        gi = inp @ w_ih.T + b_ih
        gh = h_prev @ w_hh.T + b_hh
        r = jax.nn.sigmoid(gi[:, :hid] + gh[:, :hid])
        z = jax.nn.sigmoid(gi[:, hid:2 * hid] + gh[:, hid:2 * hid])
        n = jnp.tanh(gi[:, 2 * hid:] + r * gh[:, 2 * hid:])
        h_new = (1.0 - z) * n + z * h_prev
        hs.append(h_new)
        inp = h_new
    hidden_new = jnp.stack(hs)
    pred = (jnp.concatenate([hs[-1], weighted, emb], axis=1) @ params["fc_w"].T
            + params["fc_b"])
    return pred, hidden_new


def init_params(key, output_dim, emb_dim, enc_hid_dim, dec_hid_dim, n_layers):
    de2, hid, emb = 2 * enc_hid_dim, dec_hid_dim, emb_dim
    ks = iter(jax.random.split(key, 8 + 4 * n_layers))

    def unif(k, shape, fan_in):
        s = 1.0 / np.sqrt(fan_in)
        return jax.random.uniform(k, shape, minval=-s, maxval=s, dtype=jnp.float32)

    params = {}
    params["embedding"] = jax.random.normal(next(ks), (output_dim, emb), dtype=jnp.float32)
    attn_in = hid + de2
    params["attn_w"] = unif(next(ks), (hid, attn_in), attn_in)
    params["attn_b"] = unif(next(ks), (hid,), attn_in)
    params["v_w"] = unif(next(ks), (1, hid), hid)
    w_ih, w_hh, b_ih, b_hh = [], [], [], []
    for l in range(n_layers):
        in_l = (emb + de2) if l == 0 else hid
        w_ih.append(unif(next(ks), (3 * hid, in_l), hid))
        w_hh.append(unif(next(ks), (3 * hid, hid), hid))
        b_ih.append(unif(next(ks), (3 * hid,), hid))
        b_hh.append(unif(next(ks), (3 * hid,), hid))
    params["gru_w_ih"], params["gru_w_hh"] = w_ih, w_hh
    params["gru_b_ih"], params["gru_b_hh"] = b_ih, b_hh
    fc_in = de2 + hid + emb
    params["fc_w"] = unif(next(ks), (output_dim, fc_in), fc_in)
    params["fc_b"] = unif(next(ks), (output_dim,), fc_in)
    return params


if __name__ == "__main__":
    output_dim = 512      # vocab size -> 4 lane-dense (128-wide) fc_out tiles
    emb_dim = 32
    enc_hid_dim = 32      # bidirectional encoder -> 2 * enc_hid_dim = 64 features
    dec_hid_dim = 128     # lane-dense hidden-state stores
    n_layers = 2
    batch = 8             # sublane-aligned batch
    src_len = 10          # deliberately non-multiple-of-8 reduction length

    key = jax.random.PRNGKey(0)
    k_par, k_tok, k_hid, k_enc = jax.random.split(key, 4)

    params = init_params(k_par, output_dim, emb_dim, enc_hid_dim, dec_hid_dim, n_layers)
    packed = pack_params(params, weight_dtype=jnp.bfloat16)   # one-time packing

    tokens = jax.random.randint(k_tok, (batch,), 0, output_dim, dtype=jnp.int32)
    hidden = jax.random.normal(k_hid, (n_layers, batch, dec_hid_dim), dtype=jnp.float32)
    encoder_outputs = jax.random.normal(
        k_enc, (src_len, batch, 2 * enc_hid_dim), dtype=jnp.float32)

    run = jax.jit(functools.partial(decoder_step, block_o=128))
    pred, hid_new = run(tokens, hidden, encoder_outputs, packed)
    pred = jax.block_until_ready(pred)
    hid_new = jax.block_until_ready(hid_new)

    pred_ref, hid_ref = decoder_reference(tokens, hidden, encoder_outputs, params)
    # Kernel uses bf16 weights/activations on the MXU (f32 accumulation) and an
    # approximate EUP reciprocal in the softmax -> compare at bf16-level tolerance.
    np.testing.assert_allclose(np.asarray(pred), np.asarray(pred_ref), rtol=6e-2, atol=6e-2)
    np.testing.assert_allclose(np.asarray(hid_new), np.asarray(hid_ref), rtol=6e-2, atol=6e-2)

    print("KERNEL_OK")
</pallas_src>

<mosaic_0001>
module attributes {stable_mosaic.version = 11 : i64} {
  func.func @decoder_step_kernel(%arg0: i32, %arg1: memref<8x32xbf16, #tpu.memory_space<vmem>>, %arg2: memref<2x8x128xf32, #tpu.memory_space<vmem>>, %arg3: memref<80x64xbf16, #tpu.memory_space<vmem>>, %arg4: memref<192x128xbf16, #tpu.memory_space<vmem>>, %arg5: memref<2x128xf32, #tpu.memory_space<vmem>>, %arg6: memref<96x384xbf16, #tpu.memory_space<vmem>>, %arg7: memref<2x128x384xbf16, #tpu.memory_space<vmem>>, %arg8: memref<4x384xf32, #tpu.memory_space<vmem>>, %arg9: memref<1x128x384xbf16, #tpu.memory_space<vmem>>, %arg10: memref<224x128xbf16, #tpu.memory_space<vmem>>, %arg11: memref<1x128xf32, #tpu.memory_space<vmem>>, %arg12: memref<8x128xf32, #tpu.memory_space<vmem>>, %arg13: memref<2x8x128xf32, #tpu.memory_space<vmem>>, %arg14: memref<8x224xbf16, #tpu.memory_space<vmem>>) attributes {dimension_semantics = [#tpu.dimension_semantics<arbitrary>], iteration_bounds = array<i64: 4>, scalar_prefetch = 0 : i64, scratch_operands = 1 : i64, tpu.core_type = #tpu.core_type<tc>, window_params = [{pipeline_mode = #tpu.pipeline_mode<synchronous>, transform_indices = @transform_0, window_bounds = array<i64: 8, 32>}, {pipeline_mode = #tpu.pipeline_mode<synchronous>, transform_indices = @transform_1, window_bounds = array<i64: 2, 8, 128>}, {pipeline_mode = #tpu.pipeline_mode<synchronous>, transform_indices = @transform_2, window_bounds = array<i64: 80, 64>}, {pipeline_mode = #tpu.pipeline_mode<synchronous>, transform_indices = @transform_3, window_bounds = array<i64: 192, 128>}, {pipeline_mode = #tpu.pipeline_mode<synchronous>, transform_indices = @transform_4, window_bounds = array<i64: 2, 128>}, {pipeline_mode = #tpu.pipeline_mode<synchronous>, transform_indices = @transform_5, window_bounds = array<i64: 96, 384>}, {pipeline_mode = #tpu.pipeline_mode<synchronous>, transform_indices = @transform_6, window_bounds = array<i64: 2, 128, 384>}, {pipeline_mode = #tpu.pipeline_mode<synchronous>, transform_indices = @transform_7, window_bounds = array<i64: 4, 384>}, {pipeline_mode = #tpu.pipeline_mode<synchronous>, transform_indices = @transform_8, window_bounds = array<i64: 1, 128, 384>}, {transform_indices = @transform_9, window_bounds = array<i64: 224, 128>}, {transform_indices = @transform_10, window_bounds = array<i64: 1, 128>}, {transform_indices = @transform_11, window_bounds = array<i64: 8, 128>}, {pipeline_mode = #tpu.pipeline_mode<synchronous>, transform_indices = @transform_12, window_bounds = array<i64: 2, 8, 128>}]} {
    %c0_i32 = arith.constant 0 : i32
    %0 = arith.cmpi eq, %arg0, %c0_i32 : i32
    %1 = arith.extui %0 : i1 to i32
    %c0_i32_0 = arith.constant 0 : i32
    %2 = arith.cmpi ne, %1, %c0_i32_0 : i32
    scf.if %2 {
      %c0_8 = arith.constant 0 : index
      %c0_9 = arith.constant 0 : index
      %10 = vector.load %arg1[%c0_8, %c0_9] : memref<8x32xbf16, #tpu.memory_space<vmem>>, vector<8x32xbf16>
      %c0_10 = arith.constant 0 : index
      %c0_11 = arith.constant 0 : index
      %11 = vector.load %arg3[%c0_10, %c0_11] : memref<80x64xbf16, #tpu.memory_space<vmem>>, vector<80x64xbf16>
      %c1 = arith.constant 1 : index
      %c0_12 = arith.constant 0 : index
      %c0_13 = arith.constant 0 : index
      %12 = vector.load %arg2[%c1, %c0_12, %c0_13] : memref<2x8x128xf32, #tpu.memory_space<vmem>>, vector<1x8x128xf32>
      %13 = vector.shape_cast %12 : vector<1x8x128xf32> to vector<8x128xf32>
      %14 = arith.truncf %13 : vector<8x128xf32> to vector<8x128xbf16>
      %c0_14 = arith.constant 0 : index
      %c0_15 = arith.constant 0 : index
      %15 = vector.load %arg4[%c0_14, %c0_15] : memref<192x128xbf16, #tpu.memory_space<vmem>>, vector<128x128xbf16>
      %cst_16 = arith.constant dense<0.000000e+00> : vector<8x128xf32>
      %16 = tpu.matmul %14, %15, %cst_16 {dimension_numbers = #tpu.dot_dimension_numbers<[1], [0], [0], [1], [0, 0, 1, 1], [], []>} : vector<8x128xbf16>, vector<128x128xbf16>, vector<8x128xf32> -> vector<8x128xf32>
      %c0_17 = arith.constant 0 : index
      %c0_18 = arith.constant 0 : index
      %17 = vector.load %arg5[%c0_17, %c0_18] : memref<2x128xf32, #tpu.memory_space<vmem>>, vector<1x128xf32>
      %18 = vector.broadcast %17 : vector<1x128xf32> to vector<8x128xf32>
      %19 = arith.addf %16, %18 : vector<8x128xf32>
      %c128 = arith.constant 128 : index
      %c0_19 = arith.constant 0 : index
      %20 = vector.load %arg4[%c128, %c0_19] : memref<192x128xbf16, #tpu.memory_space<vmem>>, vector<64x128xbf16>
      %cst_20 = arith.constant dense<0.000000e+00> : vector<80x128xf32>
      %21 = tpu.matmul %11, %20, %cst_20 {dimension_numbers = #tpu.dot_dimension_numbers<[1], [0], [0], [1], [0, 0, 1, 1], [], []>} : vector<80x64xbf16>, vector<64x128xbf16>, vector<80x128xf32> -> vector<80x128xf32>
      %22 = vector.shape_cast %21 : vector<80x128xf32> to vector<10x8x128xf32>
      %23 = vector.shape_cast %19 : vector<8x128xf32> to vector<1x8x128xf32>
      %24 = vector.broadcast %23 : vector<1x8x128xf32> to vector<10x8x128xf32>
      %25 = arith.addf %22, %24 : vector<10x8x128xf32>
      %26 = math.tanh %25 : vector<10x8x128xf32>
      %c1_21 = arith.constant 1 : index
      %c0_22 = arith.constant 0 : index
      %27 = vector.load %arg5[%c1_21, %c0_22] : memref<2x128xf32, #tpu.memory_space<vmem>>, vector<1x128xf32>
      %28 = vector.shape_cast %27 : vector<1x128xf32> to vector<1x1x128xf32>
      %29 = vector.broadcast %28 : vector<1x1x128xf32> to vector<10x8x128xf32>
      %30 = arith.mulf %26, %29 : vector<10x8x128xf32>
      %cst_23 = arith.constant dense<0.000000e+00> : vector<10x8xf32>
      %31 = vector.multi_reduction <add>, %30, %cst_23 [2] : vector<10x8x128xf32> to vector<10x8xf32>
      %32 = vector.shape_cast %31 : vector<10x8xf32> to vector<10x8x1xf32>
      %cst_24 = arith.constant dense<0xFF800000> : vector<8x1xf32>
      %33 = vector.multi_reduction <maximumf>, %32, %cst_24 [0] : vector<10x8x1xf32> to vector<8x1xf32>
      %34 = vector.shape_cast %33 : vector<8x1xf32> to vector<1x8x1xf32>
      %35 = vector.broadcast %34 : vector<1x8x1xf32> to vector<10x8x1xf32>
      %36 = arith.subf %32, %35 : vector<10x8x1xf32>
      %37 = math.exp %36 : vector<10x8x1xf32>
      %cst_25 = arith.constant dense<0.000000e+00> : vector<8x1xf32>
      %38 = vector.multi_reduction <add>, %37, %cst_25 [0] : vector<10x8x1xf32> to vector<8x1xf32>
      %39 = vector.shape_cast %38 : vector<8x1xf32> to vector<1x8x1xf32>
      %40 = tpu.reciprocal %39 {approx = true} : vector<1x8x1xf32> -> vector<1x8x1xf32>
      %41 = vector.broadcast %40 : vector<1x8x1xf32> to vector<10x8x1xf32>
      %42 = arith.mulf %37, %41 : vector<10x8x1xf32>
      %43 = arith.extf %11 : vector<80x64xbf16> to vector<80x64xf32>
      %44 = vector.shape_cast %43 : vector<80x64xf32> to vector<10x8x64xf32>
      %45 = vector.broadcast %42 : vector<10x8x1xf32> to vector<10x8x64xf32>
      %46 = arith.mulf %45, %44 : vector<10x8x64xf32>
      %cst_26 = arith.constant dense<0.000000e+00> : vector<8x64xf32>
      %47 = vector.multi_reduction <add>, %46, %cst_26 [0] : vector<10x8x64xf32> to vector<8x64xf32>
      %48 = arith.truncf %47 : vector<8x64xf32> to vector<8x64xbf16>
      %49 = tpu.concatenate %10, %48 in 1 : vector<8x32xbf16>, vector<8x64xbf16> -> vector<8x96xbf16>
      %c0_27 = arith.constant 0 : index
      %c0_28 = arith.constant 0 : index
      %c0_29 = arith.constant 0 : index
      %50 = vector.load %arg2[%c0_27, %c0_28, %c0_29] : memref<2x8x128xf32, #tpu.memory_space<vmem>>, vector<1x8x128xf32>
      %51 = vector.shape_cast %50 : vector<1x8x128xf32> to vector<8x128xf32>
      %c0_30 = arith.constant 0 : index
      %c0_31 = arith.constant 0 : index
      %52 = vector.load %arg6[%c0_30, %c0_31] : memref<96x384xbf16, #tpu.memory_space<vmem>>, vector<96x384xbf16>
      %cst_32 = arith.constant dense<0.000000e+00> : vector<8x384xf32>
      %53 = tpu.matmul %49, %52, %cst_32 {dimension_numbers = #tpu.dot_dimension_numbers<[1], [0], [0], [1], [0, 0, 1, 1], [], []>} : vector<8x96xbf16>, vector<96x384xbf16>, vector<8x384xf32> -> vector<8x384xf32>
      %c0_33 = arith.constant 0 : index
      %c0_34 = arith.constant 0 : index
      %54 = vector.load %arg8[%c0_33, %c0_34] : memref<4x384xf32, #tpu.memory_space<vmem>>, vector<1x384xf32>
      %55 = vector.broadcast %54 : vector<1x384xf32> to vector<8x384xf32>
      %56 = arith.addf %53, %55 : vector<8x384xf32>
      %57 = arith.truncf %51 : vector<8x128xf32> to vector<8x128xbf16>
      %c0_35 = arith.constant 0 : index
      %c0_36 = arith.constant 0 : index
      %c0_37 = arith.constant 0 : index
      %58 = vector.load %arg7[%c0_35, %c0_36, %c0_37] : memref<2x128x384xbf16, #tpu.memory_space<vmem>>, vector<1x128x384xbf16>
      %59 = vector.shape_cast %58 : vector<1x128x384xbf16> to vector<128x384xbf16>
      %cst_38 = arith.constant dense<0.000000e+00> : vector<8x384xf32>
      %60 = tpu.matmul %57, %59, %cst_38 {dimension_numbers = #tpu.dot_dimension_numbers<[1], [0], [0], [1], [0, 0, 1, 1], [], []>} : vector<8x128xbf16>, vector<128x384xbf16>, vector<8x384xf32> -> vector<8x384xf32>
      %c1_39 = arith.constant 1 : index
      %c0_40 = arith.constant 0 : index
      %61 = vector.load %arg8[%c1_39, %c0_40] : memref<4x384xf32, #tpu.memory_space<vmem>>, vector<1x384xf32>
      %62 = vector.broadcast %61 : vector<1x384xf32> to vector<8x384xf32>
      %63 = arith.addf %60, %62 : vector<8x384xf32>
      %64 = vector.extract_strided_slice %56 {offsets = [0, 0], sizes = [8, 128], strides = [1, 1]} : vector<8x384xf32> to vector<8x128xf32>
      %65 = vector.extract_strided_slice %63 {offsets = [0, 0], sizes = [8, 128], strides = [1, 1]} : vector<8x384xf32> to vector<8x128xf32>
      %66 = arith.addf %64, %65 : vector<8x128xf32>
      %67 = arith.negf %66 : vector<8x128xf32>
      %68 = math.exp %67 : vector<8x128xf32>
      %cst_41 = arith.constant 1.000000e+00 : f32
      %69 = vector.broadcast %cst_41 : f32 to vector<8x128xf32>
      %70 = arith.addf %69, %68 : vector<8x128xf32>
      %71 = arith.divf %69, %70 : vector<8x128xf32>
      %72 = vector.extract_strided_slice %56 {offsets = [0, 128], sizes = [8, 128], strides = [1, 1]} : vector<8x384xf32> to vector<8x128xf32>
      %73 = vector.extract_strided_slice %63 {offsets = [0, 128], sizes = [8, 128], strides = [1, 1]} : vector<8x384xf32> to vector<8x128xf32>
      %74 = arith.addf %72, %73 : vector<8x128xf32>
      %75 = arith.negf %74 : vector<8x128xf32>
      %76 = math.exp %75 : vector<8x128xf32>
      %cst_42 = arith.constant 1.000000e+00 : f32
      %77 = vector.broadcast %cst_42 : f32 to vector<8x128xf32>
      %78 = arith.addf %77, %76 : vector<8x128xf32>
      %79 = arith.divf %77, %78 : vector<8x128xf32>
      %80 = vector.extract_strided_slice %56 {offsets = [0, 256], sizes = [8, 128], strides = [1, 1]} : vector<8x384xf32> to vector<8x128xf32>
      %81 = vector.extract_strided_slice %63 {offsets = [0, 256], sizes = [8, 128], strides = [1, 1]} : vector<8x384xf32> to vector<8x128xf32>
      %82 = arith.mulf %71, %81 : vector<8x128xf32>
      %83 = arith.addf %80, %82 : vector<8x128xf32>
      %84 = math.tanh %83 : vector<8x128xf32>
      %cst_43 = arith.constant 1.000000e+00 : f32
      %85 = vector.broadcast %cst_43 : f32 to vector<8x128xf32>
      %86 = arith.subf %85, %79 : vector<8x128xf32>
      %87 = arith.mulf %86, %84 : vector<8x128xf32>
      %88 = arith.mulf %79, %51 : vector<8x128xf32>
      %89 = arith.addf %87, %88 : vector<8x128xf32>
      %c0_44 = arith.constant 0 : index
      %c0_45 = arith.constant 0 : index
      %c0_46 = arith.constant 0 : index
      %90 = vector.load %arg13[%c0_44, %c0_45, %c0_46] : memref<2x8x128xf32, #tpu.memory_space<vmem>>, vector<1x8x128xf32>
      %91 = vector.shape_cast %90 : vector<1x8x128xf32> to vector<8x128xf32>
      %92 = vector.shape_cast %89 : vector<8x128xf32> to vector<1x8x128xf32>
      tpu.vector_store %arg13[%c0_44, %c0_45, %c0_46], %92 {strides = array<i32>} : memref<2x8x128xf32, #tpu.memory_space<vmem>>, vector<1x8x128xf32>,
      %c1_47 = arith.constant 1 : index
      %c0_48 = arith.constant 0 : index
      %c0_49 = arith.constant 0 : index
      %93 = vector.load %arg2[%c1_47, %c0_48, %c0_49] : memref<2x8x128xf32, #tpu.memory_space<vmem>>, vector<1x8x128xf32>
      %94 = vector.shape_cast %93 : vector<1x8x128xf32> to vector<8x128xf32>
      %95 = arith.truncf %89 : vector<8x128xf32> to vector<8x128xbf16>
      %c0_50 = arith.constant 0 : index
      %c0_51 = arith.constant 0 : index
      %c0_52 = arith.constant 0 : index
      %96 = vector.load %arg9[%c0_50, %c0_51, %c0_52] : memref<1x128x384xbf16, #tpu.memory_space<vmem>>, vector<1x128x384xbf16>
      %97 = vector.shape_cast %96 : vector<1x128x384xbf16> to vector<128x384xbf16>
      %cst_53 = arith.constant dense<0.000000e+00> : vector<8x384xf32>
      %98 = tpu.matmul %95, %97, %cst_53 {dimension_numbers = #tpu.dot_dimension_numbers<[1], [0], [0], [1], [0, 0, 1, 1], [], []>} : vector<8x128xbf16>, vector<128x384xbf16>, vector<8x384xf32> -> vector<8x384xf32>
      %c2 = arith.constant 2 : index
      %c0_54 = arith.constant 0 : index
      %99 = vector.load %arg8[%c2, %c0_54] : memref<4x384xf32, #tpu.memory_space<vmem>>, vector<1x384xf32>
      %100 = vector.broadcast %99 : vector<1x384xf32> to vector<8x384xf32>
      %101 = arith.addf %98, %100 : vector<8x384xf32>
      %102 = arith.truncf %94 : vector<8x128xf32> to vector<8x128xbf16>
      %c1_55 = arith.constant 1 : index
      %c0_56 = arith.constant 0 : index
      %c0_57 = arith.constant 0 : index
      %103 = vector.load %arg7[%c1_55, %c0_56, %c0_57] : memref<2x128x384xbf16, #tpu.memory_space<vmem>>, vector<1x128x384xbf16>
      %104 = vector.shape_cast %103 : vector<1x128x384xbf16> to vector<128x384xbf16>
      %cst_58 = arith.constant dense<0.000000e+00> : vector<8x384xf32>
      %105 = tpu.matmul %102, %104, %cst_58 {dimension_numbers = #tpu.dot_dimension_numbers<[1], [0], [0], [1], [0, 0, 1, 1], [], []>} : vector<8x128xbf16>, vector<128x384xbf16>, vector<8x384xf32> -> vector<8x384xf32>
      %c3 = arith.constant 3 : index
      %c0_59 = arith.constant 0 : index
      %106 = vector.load %arg8[%c3, %c0_59] : memref<4x384xf32, #tpu.memory_space<vmem>>, vector<1x384xf32>
      %107 = vector.broadcast %106 : vector<1x384xf32> to vector<8x384xf32>
      %108 = arith.addf %105, %107 : vector<8x384xf32>
      %109 = vector.extract_strided_slice %101 {offsets = [0, 0], sizes = [8, 128], strides = [1, 1]} : vector<8x384xf32> to vector<8x128xf32>
      %110 = vector.extract_strided_slice %108 {offsets = [0, 0], sizes = [8, 128], strides = [1, 1]} : vector<8x384xf32> to vector<8x128xf32>
      %111 = arith.addf %109, %110 : vector<8x128xf32>
      %112 = arith.negf %111 : vector<8x128xf32>
      %113 = math.exp %112 : vector<8x128xf32>
      %cst_60 = arith.constant 1.000000e+00 : f32
      %114 = vector.broadcast %cst_60 : f32 to vector<8x128xf32>
      %115 = arith.addf %114, %113 : vector<8x128xf32>
      %116 = arith.divf %114, %115 : vector<8x128xf32>
      %117 = vector.extract_strided_slice %101 {offsets = [0, 128], sizes = [8, 128], strides = [1, 1]} : vector<8x384xf32> to vector<8x128xf32>
      %118 = vector.extract_strided_slice %108 {offsets = [0, 128], sizes = [8, 128], strides = [1, 1]} : vector<8x384xf32> to vector<8x128xf32>
      %119 = arith.addf %117, %118 : vector<8x128xf32>
      %120 = arith.negf %119 : vector<8x128xf32>
      %121 = math.exp %120 : vector<8x128xf32>
      %cst_61 = arith.constant 1.000000e+00 : f32
      %122 = vector.broadcast %cst_61 : f32 to vector<8x128xf32>
      %123 = arith.addf %122, %121 : vector<8x128xf32>
      %124 = arith.divf %122, %123 : vector<8x128xf32>
      %125 = vector.extract_strided_slice %101 {offsets = [0, 256], sizes = [8, 128], strides = [1, 1]} : vector<8x384xf32> to vector<8x128xf32>
      %126 = vector.extract_strided_slice %108 {offsets = [0, 256], sizes = [8, 128], strides = [1, 1]} : vector<8x384xf32> to vector<8x128xf32>
      %127 = arith.mulf %116, %126 : vector<8x128xf32>
      %128 = arith.addf %125, %127 : vector<8x128xf32>
      %129 = math.tanh %128 : vector<8x128xf32>
      %cst_62 = arith.constant 1.000000e+00 : f32
      %130 = vector.broadcast %cst_62 : f32 to vector<8x128xf32>
      %131 = arith.subf %130, %124 : vector<8x128xf32>
      %132 = arith.mulf %131, %129 : vector<8x128xf32>
      %133 = arith.mulf %124, %94 : vector<8x128xf32>
      %134 = arith.addf %132, %133 : vector<8x128xf32>
      %c1_63 = arith.constant 1 : index
      %c0_64 = arith.constant 0 : index
      %c0_65 = arith.constant 0 : index
      %135 = vector.load %arg13[%c1_63, %c0_64, %c0_65] : memref<2x8x128xf32, #tpu.memory_space<vmem>>, vector<1x8x128xf32>
      %136 = vector.shape_cast %135 : vector<1x8x128xf32> to vector<8x128xf32>
      %137 = vector.shape_cast %134 : vector<8x128xf32> to vector<1x8x128xf32>
      tpu.vector_store %arg13[%c1_63, %c0_64, %c0_65], %137 {strides = array<i32>} : memref<2x8x128xf32, #tpu.memory_space<vmem>>, vector<1x8x128xf32>,
      %138 = arith.truncf %134 : vector<8x128xf32> to vector<8x128xbf16>
      %139 = tpu.concatenate %138, %48, %10 in 1 : vector<8x128xbf16>, vector<8x64xbf16>, vector<8x32xbf16> -> vector<8x224xbf16>
      %c0_66 = arith.constant 0 : index
      %c0_67 = arith.constant 0 : index
      %140 = vector.load %arg14[%c0_66, %c0_67] : memref<8x224xbf16, #tpu.memory_space<vmem>>, vector<8x224xbf16>
      tpu.vector_store %arg14[%c0_66, %c0_67], %139 {strides = array<i32>} : memref<8x224xbf16, #tpu.memory_space<vmem>>, vector<8x224xbf16>,
    } else {
    }
    %c0 = arith.constant 0 : index
    %c0_1 = arith.constant 0 : index
    %3 = vector.load %arg14[%c0, %c0_1] : memref<8x224xbf16, #tpu.memory_space<vmem>>, vector<8x224xbf16>
    %c0_2 = arith.constant 0 : index
    %c0_3 = arith.constant 0 : index
    %4 = vector.load %arg10[%c0_2, %c0_3] : memref<224x128xbf16, #tpu.memory_space<vmem>>, vector<224x128xbf16>
    %cst = arith.constant dense<0.000000e+00> : vector<8x128xf32>
    %5 = tpu.matmul %3, %4, %cst {dimension_numbers = #tpu.dot_dimension_numbers<[1], [0], [0], [1], [0, 0, 1, 1], [], []>} : vector<8x224xbf16>, vector<224x128xbf16>, vector<8x128xf32> -> vector<8x128xf32>
    %c0_4 = arith.constant 0 : index
    %c0_5 = arith.constant 0 : index
    %6 = vector.load %arg11[%c0_4, %c0_5] : memref<1x128xf32, #tpu.memory_space<vmem>>, vector<1x128xf32>
    %7 = vector.broadcast %6 : vector<1x128xf32> to vector<8x128xf32>
    %8 = arith.addf %5, %7 : vector<8x128xf32>
    %c0_6 = arith.constant 0 : index
    %c0_7 = arith.constant 0 : index
    %9 = vector.load %arg12[%c0_6, %c0_7] : memref<8x128xf32, #tpu.memory_space<vmem>>, vector<8x128xf32>
    tpu.vector_store %arg12[%c0_6, %c0_7], %8 {strides = array<i32>} : memref<8x128xf32, #tpu.memory_space<vmem>>, vector<8x128xf32>,
    return
  }
  func.func @transform_0(%arg0: i32) -> (i32, i32) {
    %c0_i32 = arith.constant 0 : i32
    %c0_i32_0 = arith.constant 0 : i32
    %c0_i32_1 = arith.constant 0 : i32
    return %c0_i32, %c0_i32_0 : i32, i32
  }
  func.func @transform_1(%arg0: i32) -> (i32, i32, i32) {
    %c0_i32 = arith.constant 0 : i32
    %c0_i32_0 = arith.constant 0 : i32
    %c0_i32_1 = arith.constant 0 : i32
    %c0_i32_2 = arith.constant 0 : i32
    return %c0_i32, %c0_i32_0, %c0_i32_1 : i32, i32, i32
  }
  func.func @transform_2(%arg0: i32) -> (i32, i32) {
    %c0_i32 = arith.constant 0 : i32
    %c0_i32_0 = arith.constant 0 : i32
    %c0_i32_1 = arith.constant 0 : i32
    return %c0_i32, %c0_i32_0 : i32, i32
  }
  func.func @transform_3(%arg0: i32) -> (i32, i32) {
    %c0_i32 = arith.constant 0 : i32
    %c0_i32_0 = arith.constant 0 : i32
    %c0_i32_1 = arith.constant 0 : i32
    return %c0_i32, %c0_i32_0 : i32, i32
  }
  func.func @transform_4(%arg0: i32) -> (i32, i32) {
    %c0_i32 = arith.constant 0 : i32
    %c0_i32_0 = arith.constant 0 : i32
    %c0_i32_1 = arith.constant 0 : i32
    return %c0_i32, %c0_i32_0 : i32, i32
  }
  func.func @transform_5(%arg0: i32) -> (i32, i32) {
    %c0_i32 = arith.constant 0 : i32
    %c0_i32_0 = arith.constant 0 : i32
    %c0_i32_1 = arith.constant 0 : i32
    return %c0_i32, %c0_i32_0 : i32, i32
  }
  func.func @transform_6(%arg0: i32) -> (i32, i32, i32) {
    %c0_i32 = arith.constant 0 : i32
    %c0_i32_0 = arith.constant 0 : i32
    %c0_i32_1 = arith.constant 0 : i32
    %c0_i32_2 = arith.constant 0 : i32
    return %c0_i32, %c0_i32_0, %c0_i32_1 : i32, i32, i32
  }
  func.func @transform_7(%arg0: i32) -> (i32, i32) {
    %c0_i32 = arith.constant 0 : i32
    %c0_i32_0 = arith.constant 0 : i32
    %c0_i32_1 = arith.constant 0 : i32
    return %c0_i32, %c0_i32_0 : i32, i32
  }
  func.func @transform_8(%arg0: i32) -> (i32, i32, i32) {
    %c0_i32 = arith.constant 0 : i32
    %c0_i32_0 = arith.constant 0 : i32
    %c0_i32_1 = arith.constant 0 : i32
    %c0_i32_2 = arith.constant 0 : i32
    return %c0_i32, %c0_i32_0, %c0_i32_1 : i32, i32, i32
  }
  func.func @transform_9(%arg0: i32) -> (i32, i32) {
    %c0_i32 = arith.constant 0 : i32
    %c0_i32_0 = arith.constant 0 : i32
    return %c0_i32, %arg0 : i32, i32
  }
  func.func @transform_10(%arg0: i32) -> (i32, i32) {
    %c0_i32 = arith.constant 0 : i32
    %c0_i32_0 = arith.constant 0 : i32
    return %c0_i32, %arg0 : i32, i32
  }
  func.func @transform_11(%arg0: i32) -> (i32, i32) {
    %c0_i32 = arith.constant 0 : i32
    %c0_i32_0 = arith.constant 0 : i32
    return %c0_i32, %arg0 : i32, i32
  }
  func.func @transform_12(%arg0: i32) -> (i32, i32, i32) {
    %c0_i32 = arith.constant 0 : i32
    %c0_i32_0 = arith.constant 0 : i32
    %c0_i32_1 = arith.constant 0 : i32
    %c0_i32_2 = arith.constant 0 : i32
    return %c0_i32, %c0_i32_0, %c0_i32_1 : i32, i32, i32
  }
}

</mosaic_0001>

<llo_original>
// kernel: decoder_step.1
$region0: #{decoder_step.1}
  #allocation0 [shape = 'u32[]', space=smem, size = 0x4, offset = 0x4, fixed_abs, tag = 'smem constant byte address 0x4 - core index']
  #allocation1 [shape = 'u32[144,128]{1,0:T(1,128)}', space=vmem, size = 0x12000, scoped, tag = 'internal scratch']
  #allocation2 [shape = 'bf16[8,224]{1,0:T(8,128)(2,1)}', space=vmem, size = 0x1000, scoped, tag = 'scratch operand']
  %s0 = inlined_call_operand.vmem [shape: bf16[8,32], index: 0, kind: input, shape index: {}]
  %s1 = inlined_call_operand.hbm [shape: f32[2,8,128], index: 1, kind: input, shape index: {}]
  %s2 = inlined_call_operand.vmem [shape: bf16[80,64], index: 2, kind: input, shape index: {}]
  %s3 = inlined_call_operand.hbm [shape: bf16[192,128], index: 3, kind: input, shape index: {}]
  %s4 = inlined_call_operand.hbm [shape: f32[2,128], index: 4, kind: input, shape index: {}]
  %s5 = inlined_call_operand.hbm [shape: bf16[96,384], index: 5, kind: input, shape index: {}]
  %s6 = inlined_call_operand.hbm [shape: bf16[2,128,384], index: 6, kind: input, shape index: {}]
  %s7 = inlined_call_operand.hbm [shape: f32[4,384], index: 7, kind: input, shape index: {}]
  %s8 = inlined_call_operand.hbm [shape: bf16[1,128,384], index: 8, kind: input, shape index: {}]
  %s9 = inlined_call_operand.vmem [shape: bf16[224,512], index: 9, kind: input, shape index: {}]
  %s10 = inlined_call_operand.hbm [shape: f32[1,512], index: 10, kind: input, shape index: {}]
  %s11 = inlined_call_operand.hbm [shape: f32[8,512], index: 11, kind: output, shape index: {0}]
  %s12 = inlined_call_operand.hbm [shape: f32[2,8,128], index: 12, kind: output, shape index: {1}]
  %13 = xla_tuple %s11, %s12
  %s14 = sld [smem:[#allocation0]]
  $region162: #{decoder_step.1} parent=0
    _
  %s16 = ssub.s32 1, %s14
  %s17 = scalar_select 0, %s16, %s14
  $region1: #{decoder_step.1} parent=0
    #allocation3 [shape = 'u8[8192]{0}', space=vmem, size = 0x2000, scoped, tag = 'input window, operand 1, single buffered']
    #allocation4 [shape = 's32[2]{0}', space=sflag, size = 0x8, scoped, tag = 'scoped memory for decoder_step.1']
    #allocation5 [shape = 's32[2]{0}', space=sflag, size = 0x8, scoped, tag = 'scoped memory for decoder_step.1']
    #allocation6 [shape = 'u8[49152]{0}', space=vmem, size = 0xc000, scoped, tag = 'input window, operand 3, single buffered']
    #allocation7 [shape = 's32[1]{0}', space=sflag, size = 0x4, scoped, tag = 'scoped memory for decoder_step.1']
    #allocation8 [shape = 'u8[1024]{0}', space=vmem, size = 0x400, scoped, tag = 'input window, operand 4, single buffered']
    #allocation9 [shape = 'u8[73728]{0}', space=vmem, size = 0x12000, scoped, tag = 'input window, operand 5, single buffered']
    #allocation10 [shape = 's32[1]{0}', space=sflag, size = 0x4, scoped, tag = 'scoped memory for decoder_step.1']
    #allocation11 [shape = 'u8[196608]{0}', space=vmem, size = 0x30000, scoped, tag = 'input window, operand 6, single buffered']
    #allocation12 [shape = 'u8[6144]{0}', space=vmem, size = 0x1800, scoped, tag = 'input window, operand 7, single buffered']
    #allocation13 [shape = 's32[1]{0}', space=sflag, size = 0x4, scoped, tag = 'scoped memory for decoder_step.1']
    #allocation14 [shape = 'u8[98304]{0}', space=vmem, size = 0x18000, scoped, tag = 'input window, operand 8, single buffered']
    #allocation15 [shape = 'u8[114688]{0}', space=vmem, size = 0x1c000, scoped, tag = 'input window, operand 9']
    #allocation16 [shape = 'u8[1024]{0}', space=vmem, size = 0x400, scoped, tag = 'input window, operand 10']
    #allocation17 [shape = 's32[2]{0}', space=sflag, size = 0x8, scoped, tag = 'scoped memory for decoder_step.1']
    #allocation18 [shape = 'u8[8192]{0}', space=vmem, size = 0x2000, scoped, tag = 'output window, operand 0']
    #allocation19 [shape = 'u8[8192]{0}', space=vmem, size = 0x2000, scoped, tag = 'output window, operand 1, single buffered']
    #allocation20 [shape = 's32[1]{0}', space=sflag, size = 0x4, scoped, tag = 'scoped memory for decoder_step.1']
    %18 = vsyncpa [#allocation4], 0
    %19 = vsyncpa [#allocation7], 0
    %20 = vsyncpa [#allocation10], 0
    %21 = vsyncpa [#allocation13], 0
    %22 = vsyncpa [#allocation17], 0
    %s23 = scalar_lea.sflag [#allocation17], 1
    %24 = vsyncpa %s23, 0
    %25 = vsyncpa [#allocation5], 0
    %s26 = scalar_lea.sflag [#allocation5], 1
    %27 = vsyncpa %s26, 0
    %28 = vsyncpa [#allocation20], 0
    loop: start=0, step=1, limit=6
    $region2: #{decoder_step.1} parent=1 // loop_pre_header
      _
    $region3: #{decoder_step.1} parent=1 // loop_header
      %s30 = sphi 0, %s34
      %p31 = scmp.ge.s32.totalorder %s30, 6
      %s38 = sphi 0, %s38
      %s40 = sphi 0, %s38
      %s41 = sphi 0, %s40
      %s55 = sphi 0, %s41
      %s59 = sphi 0, %s59
      %s61 = sphi 0, %s59
      %s62 = sphi 0, %s61
      %s76 = sphi 0, %s62
      %s80 = sphi 0, %s80
      %s82 = sphi 0, %s80
      %s83 = sphi 0, %s82
      %s97 = sphi 0, %s83
      %s101 = sphi 0, %s101
      %s103 = sphi 0, %s101
      %s104 = sphi 0, %s103
      %s118 = sphi 0, %s104
      %s122 = sphi 0, %s122
      %s124 = sphi 0, %s122
      %s125 = sphi 0, %s124
      %s139 = sphi 0, %s125
      %s143 = sphi 0, %s143
      %s145 = sphi 0, %s143
      %s146 = sphi 0, %s145
      %s160 = sphi 0, %s146
      %s164 = sphi 0, %s164
      %s166 = sphi 0, %s164
      %s167 = sphi 0, %s166
      %s181 = sphi 0, %s167
      %s185 = sphi 0, %s185
      %s187 = sphi 0, %s185
      %s188 = sphi 0, %s187
      %s202 = sphi 0, %s188
      %s206 = sphi 0, %s206
      %s208 = sphi 0, %s206
      %s209 = sphi 0, %s208
      %s223 = sphi 0, %s209
      %s229 = sphi 0, %s231
      %s232 = sphi 0, %s229
      %s233 = sphi 0, %s232
      %s249 = sphi 0, %s233
      %s255 = sphi 0, %s257
      %s258 = sphi 0, %s255
      %s259 = sphi 0, %s258
      %s275 = sphi 0, %s259
      %s281 = sphi 0, %s283
      %s284 = sphi 0, %s281
      %s285 = sphi 0, %s284
      %s301 = sphi 0, %s285
      %s305 = sphi 0, %s305
      %s307 = sphi 0, %s305
      %s308 = sphi 0, %s307
      %s322 = sphi 0, %s308
    $region4: #{decoder_step.1} parent=1 // loop_header_branch
      %33 = sbr.rel (%p31) target = $region8
    $region5: #{decoder_step.1} parent=1 // loop_body
      %s35 = ssub.s32 %s30, 1
      %s36 = ssub.s32 %s30, 2
      %s37 = sadd.s32 %s30, 1
      %s39 = sadd.s32 %s38, 1
      %p42 = scmp.eq.s32.totalorder %s30, 3
      %p43 = scmp.ne.s32.totalorder %s38, %s40
      %p44 = scmp.eq.s32.totalorder %s30, 0
      %p45 = por %p43, %p44
      %p46 = scmp.ne.s32.totalorder %s38, %s40
      %p47 = scmp.eq.s32.totalorder %s35, 3
      %p48 = por %p46, %p47
      %p49 = scmp.ne.s32.totalorder %s40, %s41
      %p50 = scmp.eq.s32.totalorder %s35, 0
      %p51 = por %p49, %p50
      %p52 = scmp.ne.s32.totalorder %s40, %s41
      %p53 = scmp.eq.s32.totalorder %s36, 3
      %p54 = por %p52, %p53
      %p56 = scmp.ne.s32.totalorder %s41, %s55
      %p57 = scmp.eq.s32.totalorder %s36, 0
      %p58 = por %p56, %p57
      %s60 = sadd.s32 %s59, 1
      %p63 = scmp.eq.s32.totalorder %s30, 3
      %p64 = scmp.ne.s32.totalorder %s59, %s61
      %p65 = scmp.eq.s32.totalorder %s30, 0
      %p66 = por %p64, %p65
      %p67 = scmp.ne.s32.totalorder %s59, %s61
      %p68 = scmp.eq.s32.totalorder %s35, 3
      %p69 = por %p67, %p68
      %p70 = scmp.ne.s32.totalorder %s61, %s62
      %p71 = scmp.eq.s32.totalorder %s35, 0
      %p72 = por %p70, %p71
      %p73 = scmp.ne.s32.totalorder %s61, %s62
      %p74 = scmp.eq.s32.totalorder %s36, 3
      %p75 = por %p73, %p74
      %p77 = scmp.ne.s32.totalorder %s62, %s76
      %p78 = scmp.eq.s32.totalorder %s36, 0
      %p79 = por %p77, %p78
      %s81 = sadd.s32 %s80, 1
      %p84 = scmp.eq.s32.totalorder %s30, 3
      %p85 = scmp.ne.s32.totalorder %s80, %s82
      %p86 = scmp.eq.s32.totalorder %s30, 0
      %p87 = por %p85, %p86
      %p88 = scmp.ne.s32.totalorder %s80, %s82
      %p89 = scmp.eq.s32.totalorder %s35, 3
      %p90 = por %p88, %p89
      %p91 = scmp.ne.s32.totalorder %s82, %s83
      %p92 = scmp.eq.s32.totalorder %s35, 0
      %p93 = por %p91, %p92
      %p94 = scmp.ne.s32.totalorder %s82, %s83
      %p95 = scmp.eq.s32.totalorder %s36, 3
      %p96 = por %p94, %p95
      %p98 = scmp.ne.s32.totalorder %s83, %s97
      %p99 = scmp.eq.s32.totalorder %s36, 0
      %p100 = por %p98, %p99
      %s102 = sadd.s32 %s101, 1
      %p105 = scmp.eq.s32.totalorder %s30, 3
      %p106 = scmp.ne.s32.totalorder %s101, %s103
      %p107 = scmp.eq.s32.totalorder %s30, 0
      %p108 = por %p106, %p107
      %p109 = scmp.ne.s32.totalorder %s101, %s103
      %p110 = scmp.eq.s32.totalorder %s35, 3
      %p111 = por %p109, %p110
      %p112 = scmp.ne.s32.totalorder %s103, %s104
      %p113 = scmp.eq.s32.totalorder %s35, 0
      %p114 = por %p112, %p113
      %p115 = scmp.ne.s32.totalorder %s103, %s104
      %p116 = scmp.eq.s32.totalorder %s36, 3
      %p117 = por %p115, %p116
      %p119 = scmp.ne.s32.totalorder %s104, %s118
      %p120 = scmp.eq.s32.totalorder %s36, 0
      %p121 = por %p119, %p120
      %s123 = sadd.s32 %s122, 1
      %p126 = scmp.eq.s32.totalorder %s30, 3
      %p127 = scmp.ne.s32.totalorder %s122, %s124
      %p128 = scmp.eq.s32.totalorder %s30, 0
      %p129 = por %p127, %p128
      %p130 = scmp.ne.s32.totalorder %s122, %s124
      %p131 = scmp.eq.s32.totalorder %s35, 3
      %p132 = por %p130, %p131
      %p133 = scmp.ne.s32.totalorder %s124, %s125
      %p134 = scmp.eq.s32.totalorder %s35, 0
      %p135 = por %p133, %p134
      %p136 = scmp.ne.s32.totalorder %s124, %s125
      %p137 = scmp.eq.s32.totalorder %s36, 3
      %p138 = por %p136, %p137
      %p140 = scmp.ne.s32.totalorder %s125, %s139
      %p141 = scmp.eq.s32.totalorder %s36, 0
      %p142 = por %p140, %p141
      %s144 = sadd.s32 %s143, 1
      %p147 = scmp.eq.s32.totalorder %s30, 3
      %p148 = scmp.ne.s32.totalorder %s143, %s145
      %p149 = scmp.eq.s32.totalorder %s30, 0
      %p150 = por %p148, %p149
      %p151 = scmp.ne.s32.totalorder %s143, %s145
      %p152 = scmp.eq.s32.totalorder %s35, 3
      %p153 = por %p151, %p152
      %p154 = scmp.ne.s32.totalorder %s145, %s146
      %p155 = scmp.eq.s32.totalorder %s35, 0
      %p156 = por %p154, %p155
      %p157 = scmp.ne.s32.totalorder %s145, %s146
      %p158 = scmp.eq.s32.totalorder %s36, 3
      %p159 = por %p157, %p158
      %p161 = scmp.ne.s32.totalorder %s146, %s160
      %p162 = scmp.eq.s32.totalorder %s36, 0
      %p163 = por %p161, %p162
      %s165 = sadd.s32 %s164, 1
      %p168 = scmp.eq.s32.totalorder %s30, 3
      %p169 = scmp.ne.s32.totalorder %s164, %s166
      %p170 = scmp.eq.s32.totalorder %s30, 0
      %p171 = por %p169, %p170
      %p172 = scmp.ne.s32.totalorder %s164, %s166
      %p173 = scmp.eq.s32.totalorder %s35, 3
      %p174 = por %p172, %p173
      %p175 = scmp.ne.s32.totalorder %s166, %s167
      %p176 = scmp.eq.s32.totalorder %s35, 0
      %p177 = por %p175, %p176
      %p178 = scmp.ne.s32.totalorder %s166, %s167
      %p179 = scmp.eq.s32.totalorder %s36, 3
      %p180 = por %p178, %p179
      %p182 = scmp.ne.s32.totalorder %s167, %s181
      %p183 = scmp.eq.s32.totalorder %s36, 0
      %p184 = por %p182, %p183
      %s186 = sadd.s32 %s185, 1
      %p189 = scmp.eq.s32.totalorder %s30, 3
      %p190 = scmp.ne.s32.totalorder %s185, %s187
      %p191 = scmp.eq.s32.totalorder %s30, 0
      %p192 = por %p190, %p191
      %p193 = scmp.ne.s32.totalorder %s185, %s187
      %p194 = scmp.eq.s32.totalorder %s35, 3
      %p195 = por %p193, %p194
      %p196 = scmp.ne.s32.totalorder %s187, %s188
      %p197 = scmp.eq.s32.totalorder %s35, 0
      %p198 = por %p196, %p197
      %p199 = scmp.ne.s32.totalorder %s187, %s188
      %p200 = scmp.eq.s32.totalorder %s36, 3
      %p201 = por %p199, %p200
      %p203 = scmp.ne.s32.totalorder %s188, %s202
      %p204 = scmp.eq.s32.totalorder %s36, 0
      %p205 = por %p203, %p204
      %s207 = sadd.s32 %s206, 1
      %p210 = scmp.eq.s32.totalorder %s30, 3
      %p211 = scmp.ne.s32.totalorder %s206, %s208
      %p212 = scmp.eq.s32.totalorder %s30, 0
      %p213 = por %p211, %p212
      %p214 = scmp.ne.s32.totalorder %s206, %s208
      %p215 = scmp.eq.s32.totalorder %s35, 3
      %p216 = por %p214, %p215
      %p217 = scmp.ne.s32.totalorder %s208, %s209
      %p218 = scmp.eq.s32.totalorder %s35, 0
      %p219 = por %p217, %p218
      %p220 = scmp.ne.s32.totalorder %s208, %s209
      %p221 = scmp.eq.s32.totalorder %s36, 3
      %p222 = por %p220, %p221
      %p224 = scmp.ne.s32.totalorder %s209, %s223
      %p225 = scmp.eq.s32.totalorder %s36, 0
      %p226 = por %p224, %p225
      %s227 = ssub.s32 %s30, %s37
      %p228 = scmp.eq.s32.totalorder %s227, 0
      %s230 = sadd.s32 %s229, 1
      %s231 = scalar_select %p228, %s229, %s230
      %p234 = pneg %p228
      %p235 = scmp.eq.s32.totalorder %s30, 3
      %p236 = por %p234, %p235
      %p237 = scmp.ne.s32.totalorder %s229, %s232
      %p238 = scmp.eq.s32.totalorder %s30, 0
      %p239 = por %p237, %p238
      %p240 = scmp.ne.s32.totalorder %s229, %s232
      %p241 = scmp.eq.s32.totalorder %s35, 3
      %p242 = por %p240, %p241
      %p243 = scmp.ne.s32.totalorder %s232, %s233
      %p244 = scmp.eq.s32.totalorder %s35, 0
      %p245 = por %p243, %p244
      %p246 = scmp.ne.s32.totalorder %s232, %s233
      %p247 = scmp.eq.s32.totalorder %s36, 3
      %p248 = por %p246, %p247
      %p250 = scmp.ne.s32.totalorder %s233, %s249
      %p251 = scmp.eq.s32.totalorder %s36, 0
      %p252 = por %p250, %p251
      %s253 = ssub.s32 %s30, %s37
      %p254 = scmp.eq.s32.totalorder %s253, 0
      %s256 = sadd.s32 %s255, 1
      %s257 = scalar_select %p254, %s255, %s256
      %p260 = pneg %p254
      %p261 = scmp.eq.s32.totalorder %s30, 3
      %p262 = por %p260, %p261
      %p263 = scmp.ne.s32.totalorder %s255, %s258
      %p264 = scmp.eq.s32.totalorder %s30, 0
      %p265 = por %p263, %p264
      %p266 = scmp.ne.s32.totalorder %s255, %s258
      %p267 = scmp.eq.s32.totalorder %s35, 3
      %p268 = por %p266, %p267
      %p269 = scmp.ne.s32.totalorder %s258, %s259
      %p270 = scmp.eq.s32.totalorder %s35, 0
      %p271 = por %p269, %p270
      %p272 = scmp.ne.s32.totalorder %s258, %s259
      %p273 = scmp.eq.s32.totalorder %s36, 3
      %p274 = por %p272, %p273
      %p276 = scmp.ne.s32.totalorder %s259, %s275
      %p277 = scmp.eq.s32.totalorder %s36, 0
      %p278 = por %p276, %p277
      %s279 = ssub.s32 %s30, %s37
      %p280 = scmp.eq.s32.totalorder %s279, 0
      %s282 = sadd.s32 %s281, 1
      %s283 = scalar_select %p280, %s281, %s282
      %p286 = pneg %p280
      %p287 = scmp.eq.s32.totalorder %s30, 3
      %p288 = por %p286, %p287
      %p289 = scmp.ne.s32.totalorder %s281, %s284
      %p290 = scmp.eq.s32.totalorder %s30, 0
      %p291 = por %p289, %p290
      %p292 = scmp.ne.s32.totalorder %s281, %s284
      %p293 = scmp.eq.s32.totalorder %s35, 3
      %p294 = por %p292, %p293
      %p295 = scmp.ne.s32.totalorder %s284, %s285
      %p296 = scmp.eq.s32.totalorder %s35, 0
      %p297 = por %p295, %p296
      %p298 = scmp.ne.s32.totalorder %s284, %s285
      %p299 = scmp.eq.s32.totalorder %s36, 3
      %p300 = por %p298, %p299
      %p302 = scmp.ne.s32.totalorder %s285, %s301
      %p303 = scmp.eq.s32.totalorder %s36, 0
      %p304 = por %p302, %p303
      %s306 = sadd.s32 %s305, 1
      %p309 = scmp.eq.s32.totalorder %s30, 3
      %p310 = scmp.ne.s32.totalorder %s305, %s307
      %p311 = scmp.eq.s32.totalorder %s30, 0
      %p312 = por %p310, %p311
      %p313 = scmp.ne.s32.totalorder %s305, %s307
      %p314 = scmp.eq.s32.totalorder %s35, 3
      %p315 = por %p313, %p314
      %p316 = scmp.ne.s32.totalorder %s307, %s308
      %p317 = scmp.eq.s32.totalorder %s35, 0
      %p318 = por %p316, %p317
      %p319 = scmp.ne.s32.totalorder %s307, %s308
      %p320 = scmp.eq.s32.totalorder %s36, 3
      %p321 = por %p319, %p320
      %p323 = scmp.ne.s32.totalorder %s308, %s322
      %p324 = scmp.eq.s32.totalorder %s36, 0
      %p325 = por %p323, %p324
      %p326 = scmp.le.s32.totalorder 1, %s30
      %p327 = scmp.lt.s32.totalorder %s30, 5
      %p328 = pnand %p326, %p327
      %p329 = pneg %p328
      // Predicated region
      $region9: #{decoder_step.1} parent=5 // pred_check
        _
      $region10: #{decoder_step.1} parent=5 // pred_check_branch
        %331 = sbr.rel (%p328) target = $region12
      $region11: #{decoder_step.1} parent=5 // pred_region
        %s332 = ssub.s32 %s30, 1
        // Predicated region
        $region13: #{decoder_step.1} parent=11 // pred_check
          %p333 = pneg %p51
        $region14: #{decoder_step.1} parent=11 // pred_check_branch
          %335 = sbr.rel (%p333) target = $region16
        $region15: #{decoder_step.1} parent=11 // pred_region
          _
        $region16: #{decoder_step.1} parent=11 // pred_fallthru
          _
        // Predicated region
        $region17: #{decoder_step.1} parent=11 // pred_check
          %p336 = pneg %p72
        $region18: #{decoder_step.1} parent=11 // pred_check_branch
          %338 = sbr.rel (%p336) target = $region20
        $region19: #{decoder_step.1} parent=11 // pred_region
          %s340 = ssub.s32 256, 256
          %341 = vsyncadd [#allocation4], %s340
          %s342 = sshll.u32 [#allocation3], 4
          %s343 = int_to_ptr.vmem [resolvable:$true] %s342
          %348 = dma.hbm_to_vmem [thread:$0]  %s1, 256, %s343, [#allocation4], 128, 128, 8
        $region20: #{decoder_step.1} parent=11 // pred_fallthru
          _
        // Predicated region
        $region21: #{decoder_step.1} parent=11 // pred_check
          %p349 = pneg %p93
        $region22: #{decoder_step.1} parent=11 // pred_check_branch
          %351 = sbr.rel (%p349) target = $region24
        $region23: #{decoder_step.1} parent=11 // pred_region
          _
        $region24: #{decoder_step.1} parent=11 // pred_fallthru
          _
        // Predicated region
        $region25: #{decoder_step.1} parent=11 // pred_check
          %p352 = pneg %p114
        $region26: #{decoder_step.1} parent=11 // pred_check_branch
          %354 = sbr.rel (%p352) target = $region28
        $region27: #{decoder_step.1} parent=11 // pred_region
          %s356 = ssub.s32 1536, 1536
          %357 = vsyncadd [#allocation7], %s356
          %s358 = sshll.u32 [#allocation6], 4
          %s359 = int_to_ptr.vmem [resolvable:$true] %s358
          %364 = dma.hbm_to_vmem [thread:$0]  %s3, 1536, %s359, [#allocation7], 64, 64, 4
        $region28: #{decoder_step.1} parent=11 // pred_fallthru
          _
        // Predicated region
        $region29: #{decoder_step.1} parent=11 // pred_check
          %p365 = pneg %p135
        $region30: #{decoder_step.1} parent=11 // pred_check_branch
          %367 = sbr.rel (%p365) target = $region32
        $region31: #{decoder_step.1} parent=11 // pred_region
          %s369 = ssub.s32 32, 32
          %370 = vsyncadd [#allocation7], %s369
          %s372 = sshll.u32 [#allocation8], 4
          %s373 = int_to_ptr.vmem [resolvable:$true] %s372
          %375 = dma.hbm_to_vmem [thread:$0]  %s4, 32, %s373, [#allocation7]
        $region32: #{decoder_step.1} parent=11 // pred_fallthru
          _
        // Predicated region
        $region33: #{decoder_step.1} parent=11 // pred_check
          %p376 = pneg %p156
        $region34: #{decoder_step.1} parent=11 // pred_check_branch
          %378 = sbr.rel (%p376) target = $region36
        $region35: #{decoder_step.1} parent=11 // pred_region
          %s380 = ssub.s32 2304, 2304
          %381 = vsyncadd [#allocation10], %s380
          %s382 = sshll.u32 [#allocation9], 4
          %s383 = int_to_ptr.vmem [resolvable:$true] %s382
          %388 = dma.hbm_to_vmem [thread:$0]  %s5, 2304, %s383, [#allocation10], 192, 192, 12
        $region36: #{decoder_step.1} parent=11 // pred_fallthru
          _
        // Predicated region
        $region37: #{decoder_step.1} parent=11 // pred_check
          %p389 = pneg %p177
        $region38: #{decoder_step.1} parent=11 // pred_check_branch
          %391 = sbr.rel (%p389) target = $region40
        $region39: #{decoder_step.1} parent=11 // pred_region
          %s393 = ssub.s32 6144, 6144
          %394 = vsyncadd [#allocation10], %s393
          %s395 = sshll.u32 [#allocation11], 4
          %s396 = int_to_ptr.vmem [resolvable:$true] %s395
          %401 = dma.hbm_to_vmem [thread:$0]  %s6, 6144, %s396, [#allocation10], 192, 192, 12
        $region40: #{decoder_step.1} parent=11 // pred_fallthru
          _
        // Predicated region
        $region41: #{decoder_step.1} parent=11 // pred_check
          %p402 = pneg %p198
        $region42: #{decoder_step.1} parent=11 // pred_check_branch
          %404 = sbr.rel (%p402) target = $region44
        $region43: #{decoder_step.1} parent=11 // pred_region
          %s406 = ssub.s32 192, 192
          %407 = vsyncadd [#allocation13], %s406
          %s409 = sshll.u32 [#allocation12], 4
          %s410 = int_to_ptr.vmem [resolvable:$true] %s409
          %412 = dma.hbm_to_vmem [thread:$0]  %s7, 192, %s410, [#allocation13]
        $region44: #{decoder_step.1} parent=11 // pred_fallthru
          _
        // Predicated region
        $region45: #{decoder_step.1} parent=11 // pred_check
          %p413 = pneg %p219
        $region46: #{decoder_step.1} parent=11 // pred_check_branch
          %415 = sbr.rel (%p413) target = $region48
        $region47: #{decoder_step.1} parent=11 // pred_region
          %s417 = ssub.s32 3072, 3072
          %418 = vsyncadd [#allocation13], %s417
          %s419 = sshll.u32 [#allocation14], 4
          %s420 = int_to_ptr.vmem [resolvable:$true] %s419
          %425 = dma.hbm_to_vmem [thread:$0]  %s8, 3072, %s420, [#allocation13], 192, 192, 12
        $region48: #{decoder_step.1} parent=11 // pred_fallthru
          _
      $region12: #{decoder_step.1} parent=5 // pred_fallthru
        _
      %p426 = scmp.lt.s32.totalorder %s30, 4
      // Predicated region
      $region49: #{decoder_step.1} parent=5 // pred_check
        %p427 = pneg %p426
      $region50: #{decoder_step.1} parent=5 // pred_check_branch
        %429 = sbr.rel (%p427) target = $region52
      $region51: #{decoder_step.1} parent=5 // pred_region
        // Predicated region
        $region53: #{decoder_step.1} parent=51 // pred_check
          %p430 = pneg %p239
        $region54: #{decoder_step.1} parent=51 // pred_check_branch
          %432 = sbr.rel (%p430) target = $region56
        $region55: #{decoder_step.1} parent=51 // pred_region
          %s433 = sand.u32 %s229, 1
          %s434 = sand.u32 %s229, 1
          %s435 = smul.addr %s434, 112
          %s436 = scalar_lea.vmem [#allocation15], %s435
          %s437 = smul.addr %s30, 4
          %s438 = scalar_lea.vmem %s9, %s437
          // Predicated region
          $region57: #{decoder_step.1} parent=55 // pred_check
            _
          $region58: #{decoder_step.1} parent=55 // pred_check_branch
            %440 = sbr.rel (0) target = $region60
          $region59: #{decoder_step.1} parent=55 // pred_region
            // Predicated region
            $region61: #{decoder_step.1} parent=59 // pred_check
              _
            $region62: #{decoder_step.1} parent=59 // pred_check_branch
              %442 = sbr.rel target = $region64
            $region63: #{decoder_step.1} parent=59 // pred_region
              // Predicated region
              $region76: #{decoder_step.1} parent=63 // pred_check
                _
              $region77: #{decoder_step.1} parent=63 // pred_check_branch
                %511 = sbr.rel (0) target = $region79
              $region78: #{decoder_step.1} parent=63 // pred_region
                loop: start=0, step=1, limit=1
                $region80: #{decoder_step.1} parent=78 // loop_pre_header
                  _
                $region81: #{decoder_step.1} parent=78 // loop_header
                  %s513 = sphi 0, %s517
                  %p514 = scmp.ge.s32.totalorder %s513, 1
                  %s518 = sphi %s438, %s438
                  %s519 = sphi %s436, %s436
                $region82: #{decoder_step.1} parent=78 // loop_header_branch
                  %516 = sbr.rel (%p514) target = $region86
                $region83: #{decoder_step.1} parent=78 // loop_body
                  _
                $region84: #{decoder_step.1} parent=78 // loop_footer
                  %s517 = sadd.s32 1, %s513
                $region85: #{decoder_step.1} parent=78 // loop_footer_branch
                  %512 = sbr.rel target = $region81
                $region86: #{decoder_step.1} parent=78 // loop_exit
                  _
                loop: start=0, step=1, limit=1
                $region87: #{decoder_step.1} parent=78 // loop_pre_header
                  _
                $region88: #{decoder_step.1} parent=78 // loop_header
                  %s522 = sphi 0, %s526
                  %p523 = scmp.ge.s32.totalorder %s522, 1
                  %s527 = sphi %s438, %s438
                  %s528 = sphi %s436, %s436
                $region89: #{decoder_step.1} parent=78 // loop_header_branch
                  %525 = sbr.rel (%p523) target = $region93
                $region90: #{decoder_step.1} parent=78 // loop_body
                  %v529 = vld [vmem:[%s527] sm:$0xf]
                  %530 = vst [vmem:[%s528] sm:$0xf] %v529
                  %v531 = vld [vmem:[%s527 + $0x10] sm:$0xf]
                  %532 = vst [vmem:[%s528 + $0x4] sm:$0xf] %v531
                  %v533 = vld [vmem:[%s527 + $0x20] sm:$0xf]
                  %534 = vst [vmem:[%s528 + $0x8] sm:$0xf] %v533
                  %v535 = vld [vmem:[%s527 + $0x30] sm:$0xf]
                  %536 = vst [vmem:[%s528 + $0xc] sm:$0xf] %v535
                  %v537 = vld [vmem:[%s527 + $0x40] sm:$0xf]
                  %538 = vst [vmem:[%s528 + $0x10] sm:$0xf] %v537
                  %v539 = vld [vmem:[%s527 + $0x50] sm:$0xf]
                  %540 = vst [vmem:[%s528 + $0x14] sm:$0xf] %v539
                  %v541 = vld [vmem:[%s527 + $0x60] sm:$0xf]
                  %542 = vst [vmem:[%s528 + $0x18] sm:$0xf] %v541
                  %v543 = vld [vmem:[%s527 + $0x70] sm:$0xf]
                  %544 = vst [vmem:[%s528 + $0x1c] sm:$0xf] %v543
                  %v545 = vld [vmem:[%s527 + $0x80] sm:$0xf]
                  %546 = vst [vmem:[%s528 + $0x20] sm:$0xf] %v545
                  %v547 = vld [vmem:[%s527 + $0x90] sm:$0xf]
                  %548 = vst [vmem:[%s528 + $0x24] sm:$0xf] %v547
                  %v549 = vld [vmem:[%s527 + $0xa0] sm:$0xf]
                  %550 = vst [vmem:[%s528 + $0x28] sm:$0xf] %v549
                  %v551 = vld [vmem:[%s527 + $0xb0] sm:$0xf]
                  %552 = vst [vmem:[%s528 + $0x2c] sm:$0xf] %v551
                  %v553 = vld [vmem:[%s527 + $0xc0] sm:$0xf]
                  %554 = vst [vmem:[%s528 + $0x30] sm:$0xf] %v553
                  %v555 = vld [vmem:[%s527 + $0xd0] sm:$0xf]
                  %556 = vst [vmem:[%s528 + $0x34] sm:$0xf] %v555
                  %v557 = vld [vmem:[%s527 + $0xe0] sm:$0xf]
                  %558 = vst [vmem:[%s528 + $0x38] sm:$0xf] %v557
                  %v559 = vld [vmem:[%s527 + $0xf0] sm:$0xf]
                  %560 = vst [vmem:[%s528 + $0x3c] sm:$0xf] %v559
                  %v561 = vld [vmem:[%s527 + $0x100] sm:$0xf]
                  %562 = vst [vmem:[%s528 + $0x40] sm:$0xf] %v561
                  %v563 = vld [vmem:[%s527 + $0x110] sm:$0xf]
                  %564 = vst [vmem:[%s528 + $0x44] sm:$0xf] %v563
                  %v565 = vld [vmem:[%s527 + $0x120] sm:$0xf]
                  %566 = vst [vmem:[%s528 + $0x48] sm:$0xf] %v565
                  %v567 = vld [vmem:[%s527 + $0x130] sm:$0xf]
                  %568 = vst [vmem:[%s528 + $0x4c] sm:$0xf] %v567
                  %v569 = vld [vmem:[%s527 + $0x140] sm:$0xf]
                  %570 = vst [vmem:[%s528 + $0x50] sm:$0xf] %v569
                  %v571 = vld [vmem:[%s527 + $0x150] sm:$0xf]
                  %572 = vst [vmem:[%s528 + $0x54] sm:$0xf] %v571
                  %v573 = vld [vmem:[%s527 + $0x160] sm:$0xf]
                  %574 = vst [vmem:[%s528 + $0x58] sm:$0xf] %v573
                  %v575 = vld [vmem:[%s527 + $0x170] sm:$0xf]
                  %576 = vst [vmem:[%s528 + $0x5c] sm:$0xf] %v575
                  %v577 = vld [vmem:[%s527 + $0x180] sm:$0xf]
                  %578 = vst [vmem:[%s528 + $0x60] sm:$0xf] %v577
                  %v579 = vld [vmem:[%s527 + $0x190] sm:$0xf]
                  %580 = vst [vmem:[%s528 + $0x64] sm:$0xf] %v579
                  %v581 = vld [vmem:[%s527 + $0x1a0] sm:$0xf]
                  %582 = vst [vmem:[%s528 + $0x68] sm:$0xf] %v581
                  %v583 = vld [vmem:[%s527 + $0x1b0] sm:$0xf]
                  %584 = vst [vmem:[%s528 + $0x6c] sm:$0xf] %v583
                $region91: #{decoder_step.1} parent=78 // loop_footer
                  %s526 = sadd.s32 1, %s522
                $region92: #{decoder_step.1} parent=78 // loop_footer_branch
                  %521 = sbr.rel target = $region88
                $region93: #{decoder_step.1} parent=78 // loop_exit
                  _
              $region79: #{decoder_step.1} parent=63 // pred_fallthru
                _
            $region64: #{decoder_step.1} parent=59 // pred_fallthru
              _
            // Predicated region
            $region65: #{decoder_step.1} parent=59 // pred_check
              _
            $region66: #{decoder_step.1} parent=59 // pred_check_branch
              %444 = sbr.rel (0) target = $region68
            $region67: #{decoder_step.1} parent=59 // pred_region
              loop: start=0, step=1, limit=1
              $region69: #{decoder_step.1} parent=67 // loop_pre_header
                _
              $region70: #{decoder_step.1} parent=67 // loop_header
                %s447 = sphi 0, %s451
                %p448 = scmp.ge.s32.totalorder %s447, 1
                %s452 = sphi %s438, %s438
                %s453 = sphi %s436, %s436
              $region71: #{decoder_step.1} parent=67 // loop_header_branch
                %450 = sbr.rel (%p448) target = $region75
              $region72: #{decoder_step.1} parent=67 // loop_body
                %v454 = vld [vmem:[%s452] sm:$0xf]
                %455 = vst [vmem:[%s453] sm:$0xf] %v454
                %v456 = vld [vmem:[%s452 + $0x10] sm:$0xf]
                %457 = vst [vmem:[%s453 + $0x4] sm:$0xf] %v456
                %v458 = vld [vmem:[%s452 + $0x20] sm:$0xf]
                %459 = vst [vmem:[%s453 + $0x8] sm:$0xf] %v458
                %v460 = vld [vmem:[%s452 + $0x30] sm:$0xf]
                %461 = vst [vmem:[%s453 + $0xc] sm:$0xf] %v460
                %v462 = vld [vmem:[%s452 + $0x40] sm:$0xf]
                %463 = vst [vmem:[%s453 + $0x10] sm:$0xf] %v462
                %v464 = vld [vmem:[%s452 + $0x50] sm:$0xf]
                %465 = vst [vmem:[%s453 + $0x14] sm:$0xf] %v464
                %v466 = vld [vmem:[%s452 + $0x60] sm:$0xf]
                %467 = vst [vmem:[%s453 + $0x18] sm:$0xf] %v466
                %v468 = vld [vmem:[%s452 + $0x70] sm:$0xf]
                %469 = vst [vmem:[%s453 + $0x1c] sm:$0xf] %v468
                %v470 = vld [vmem:[%s452 + $0x80] sm:$0xf]
                %471 = vst [vmem:[%s453 + $0x20] sm:$0xf] %v470
                %v472 = vld [vmem:[%s452 + $0x90] sm:$0xf]
                %473 = vst [vmem:[%s453 + $0x24] sm:$0xf] %v472
                %v474 = vld [vmem:[%s452 + $0xa0] sm:$0xf]
                %475 = vst [vmem:[%s453 + $0x28] sm:$0xf] %v474
                %v476 = vld [vmem:[%s452 + $0xb0] sm:$0xf]
                %477 = vst [vmem:[%s453 + $0x2c] sm:$0xf] %v476
                %v478 = vld [vmem:[%s452 + $0xc0] sm:$0xf]
                %479 = vst [vmem:[%s453 + $0x30] sm:$0xf] %v478
                %v480 = vld [vmem:[%s452 + $0xd0] sm:$0xf]
                %481 = vst [vmem:[%s453 + $0x34] sm:$0xf] %v480
                %v482 = vld [vmem:[%s452 + $0xe0] sm:$0xf]
                %483 = vst [vmem:[%s453 + $0x38] sm:$0xf] %v482
                %v484 = vld [vmem:[%s452 + $0xf0] sm:$0xf]
                %485 = vst [vmem:[%s453 + $0x3c] sm:$0xf] %v484
                %v486 = vld [vmem:[%s452 + $0x100] sm:$0xf]
                %487 = vst [vmem:[%s453 + $0x40] sm:$0xf] %v486
                %v488 = vld [vmem:[%s452 + $0x110] sm:$0xf]
                %489 = vst [vmem:[%s453 + $0x44] sm:$0xf] %v488
                %v490 = vld [vmem:[%s452 + $0x120] sm:$0xf]
                %491 = vst [vmem:[%s453 + $0x48] sm:$0xf] %v490
                %v492 = vld [vmem:[%s452 + $0x130] sm:$0xf]
                %493 = vst [vmem:[%s453 + $0x4c] sm:$0xf] %v492
                %v494 = vld [vmem:[%s452 + $0x140] sm:$0xf]
                %495 = vst [vmem:[%s453 + $0x50] sm:$0xf] %v494
                %v496 = vld [vmem:[%s452 + $0x150] sm:$0xf]
                %497 = vst [vmem:[%s453 + $0x54] sm:$0xf] %v496
                %v498 = vld [vmem:[%s452 + $0x160] sm:$0xf]
                %499 = vst [vmem:[%s453 + $0x58] sm:$0xf] %v498
                %v500 = vld [vmem:[%s452 + $0x170] sm:$0xf]
                %501 = vst [vmem:[%s453 + $0x5c] sm:$0xf] %v500
                %v502 = vld [vmem:[%s452 + $0x180] sm:$0xf]
                %503 = vst [vmem:[%s453 + $0x60] sm:$0xf] %v502
                %v504 = vld [vmem:[%s452 + $0x190] sm:$0xf]
                %505 = vst [vmem:[%s453 + $0x64] sm:$0xf] %v504
                %v506 = vld [vmem:[%s452 + $0x1a0] sm:$0xf]
                %507 = vst [vmem:[%s453 + $0x68] sm:$0xf] %v506
                %v508 = vld [vmem:[%s452 + $0x1b0] sm:$0xf]
                %509 = vst [vmem:[%s453 + $0x6c] sm:$0xf] %v508
              $region73: #{decoder_step.1} parent=67 // loop_footer
                %s451 = sadd.s32 1, %s447
              $region74: #{decoder_step.1} parent=67 // loop_footer_branch
                %446 = sbr.rel target = $region70
              $region75: #{decoder_step.1} parent=67 // loop_exit
                _
            $region68: #{decoder_step.1} parent=59 // pred_fallthru
              _
          $region60: #{decoder_step.1} parent=55 // pred_fallthru
            _
          %585 = vnop
        $region56: #{decoder_step.1} parent=51 // pred_fallthru
          _
        // Predicated region
        $region94: #{decoder_step.1} parent=51 // pred_check
          %p586 = pneg %p265
        $region95: #{decoder_step.1} parent=51 // pred_check_branch
          %588 = sbr.rel (%p586) target = $region97
        $region96: #{decoder_step.1} parent=51 // pred_region
          %s589 = sand.u32 %s255, 1
          %s590 = scalar_lea.sflag [#allocation17], %s589
          %s591 = sand.u32 %s255, 1
          %s592 = scalar_lea.vmem [#allocation16], %s591
          %s594 = ssub.s32 16, 16
          %595 = vsyncadd %s590, %s594
          %s596 = smul.addr %s30, 16
          %s597 = scalar_lea.hbm %s10, %s596
          %s599 = sshll.u32 %s592, 4
          %s600 = int_to_ptr.vmem [resolvable:$true] %s599
          %602 = dma.hbm_to_vmem [thread:$0]  %s597, 16, %s600, %s590
        $region97: #{decoder_step.1} parent=51 // pred_fallthru
          _
      $region52: #{decoder_step.1} parent=5 // pred_fallthru
        _
      %p603 = scmp.le.s32.totalorder 1, %s30
      %p604 = scmp.lt.s32.totalorder %s30, 5
      %p605 = pnand %p603, %p604
      %p606 = pneg %p605
      // Predicated region
      $region98: #{decoder_step.1} parent=5 // pred_check
        _
      $region99: #{decoder_step.1} parent=5 // pred_check_branch
        %608 = sbr.rel (%p605) target = $region101
      $region100: #{decoder_step.1} parent=5 // pred_region
        %s609 = ssub.s32 %s30, 1
        // Predicated region
        $region102: #{decoder_step.1} parent=100 // pred_check
          %p610 = pneg %p72
        $region103: #{decoder_step.1} parent=100 // pred_check_branch
          %612 = sbr.rel (%p610) target = $region105
        $region104: #{decoder_step.1} parent=100 // pred_region
          %613 = dma.done [#allocation4], 256
        $region105: #{decoder_step.1} parent=100 // pred_fallthru
          _
        // Predicated region
        $region106: #{decoder_step.1} parent=100 // pred_check
          %p614 = pneg %p114
        $region107: #{decoder_step.1} parent=100 // pred_check_branch
          %616 = sbr.rel (%p614) target = $region109
        $region108: #{decoder_step.1} parent=100 // pred_region
          %617 = dma.done [#allocation7], 1536
        $region109: #{decoder_step.1} parent=100 // pred_fallthru
          _
        // Predicated region
        $region110: #{decoder_step.1} parent=100 // pred_check
          %p618 = pneg %p135
        $region111: #{decoder_step.1} parent=100 // pred_check_branch
          %620 = sbr.rel (%p618) target = $region113
        $region112: #{decoder_step.1} parent=100 // pred_region
          %621 = dma.done [#allocation7], 32
        $region113: #{decoder_step.1} parent=100 // pred_fallthru
          _
        // Predicated region
        $region114: #{decoder_step.1} parent=100 // pred_check
          %p622 = pneg %p156
        $region115: #{decoder_step.1} parent=100 // pred_check_branch
          %624 = sbr.rel (%p622) target = $region117
        $region116: #{decoder_step.1} parent=100 // pred_region
          %625 = dma.done [#allocation10], 2304
        $region117: #{decoder_step.1} parent=100 // pred_fallthru
          _
        // Predicated region
        $region118: #{decoder_step.1} parent=100 // pred_check
          %p626 = pneg %p177
        $region119: #{decoder_step.1} parent=100 // pred_check_branch
          %628 = sbr.rel (%p626) target = $region121
        $region120: #{decoder_step.1} parent=100 // pred_region
          %629 = dma.done [#allocation10], 6144
        $region121: #{decoder_step.1} parent=100 // pred_fallthru
          _
        // Predicated region
        $region122: #{decoder_step.1} parent=100 // pred_check
          %p630 = pneg %p198
        $region123: #{decoder_step.1} parent=100 // pred_check_branch
          %632 = sbr.rel (%p630) target = $region125
        $region124: #{decoder_step.1} parent=100 // pred_region
          %633 = dma.done [#allocation13], 192
        $region125: #{decoder_step.1} parent=100 // pred_fallthru
          _
        // Predicated region
        $region126: #{decoder_step.1} parent=100 // pred_check
          %p634 = pneg %p219
        $region127: #{decoder_step.1} parent=100 // pred_check_branch
          %636 = sbr.rel (%p634) target = $region129
        $region128: #{decoder_step.1} parent=100 // pred_region
          %637 = dma.done [#allocation13], 3072
        $region129: #{decoder_step.1} parent=100 // pred_fallthru
          _
        %s638 = sand.u32 %s232, 1
        %s639 = sand.u32 %s232, 1
        %s640 = smul.addr %s639, 112
        %s641 = scalar_lea.vmem [#allocation15], %s640
        // Predicated region
        $region130: #{decoder_step.1} parent=100 // pred_check
          %p642 = pneg %p245
        $region131: #{decoder_step.1} parent=100 // pred_check_branch
          %644 = sbr.rel (%p642) target = $region133
        $region132: #{decoder_step.1} parent=100 // pred_region
          _
        $region133: #{decoder_step.1} parent=100 // pred_fallthru
          _
        %s645 = sand.u32 %s258, 1
        %s646 = scalar_lea.sflag [#allocation17], %s645
        %s647 = sand.u32 %s258, 1
        %s648 = scalar_lea.vmem [#allocation16], %s647
        // Predicated region
        $region134: #{decoder_step.1} parent=100 // pred_check
          %p649 = pneg %p271
        $region135: #{decoder_step.1} parent=100 // pred_check_branch
          %651 = sbr.rel (%p649) target = $region137
        $region136: #{decoder_step.1} parent=100 // pred_region
          %652 = dma.done %s646, 16
        $region137: #{decoder_step.1} parent=100 // pred_fallthru
          _
        %p653 = pneg %p51
        %p654 = pneg %p48
        %p655 = pneg %p72
        %p656 = pneg %p69
        %p657 = pneg %p93
        %p658 = pneg %p90
        %p659 = pneg %p114
        %p660 = pneg %p111
        %p661 = pneg %p135
        %p662 = pneg %p132
        %p663 = pneg %p156
        %p664 = pneg %p153
        %p665 = pneg %p177
        %p666 = pneg %p174
        %p667 = pneg %p198
        %p668 = pneg %p195
        %p669 = pneg %p219
        %p670 = pneg %p216
        %s671 = sand.u32 %s232, 1
        %s672 = sand.u32 %s232, 1
        %s673 = smul.addr %s672, 112
        %s674 = scalar_lea.vmem [#allocation15], %s673
        %p675 = pneg %p245
        %p676 = pneg %p242
        %s677 = sand.u32 %s258, 1
        %s678 = scalar_lea.sflag [#allocation17], %s677
        %s679 = sand.u32 %s258, 1
        %s680 = scalar_lea.vmem [#allocation16], %s679
        %p681 = pneg %p271
        %p682 = pneg %p268
        %p683 = pneg %p297
        %p684 = pneg %p294
        %s685 = sand.u32 %s284, 1
        %s686 = scalar_lea.sflag [#allocation5], %s685
        %s687 = sand.u32 %s284, 1
        %s688 = smul.addr %s687, 8
        %s689 = scalar_lea.vmem [#allocation18], %s688
        %p690 = pneg %p318
        %p691 = pneg %p315
        %p693 = scmp.eq.s32.totalorder %s35, 0
        // Predicated region
        $region138: #{decoder_step.1} parent=100 // pred_check
          %p694 = pneg %p693
        $region139: #{decoder_step.1} parent=100 // pred_check_branch
          %696 = sbr.rel (%p694) target = $region141
        $region140: #{decoder_step.1} parent=100 // pred_region
          %v697 = vld [vmem:[%s0] sm:$0xf]
          %v698 = vld [vmem:[%s2] sm:$0xf]
          %v699 = vld [vmem:[%s2 + $0x4] sm:$0xf]
          %v700 = vld [vmem:[%s2 + $0x8] sm:$0xf]
          %v701 = vld [vmem:[%s2 + $0xc] sm:$0xf]
          %v702 = vld [vmem:[%s2 + $0x10] sm:$0xf]
          %v703 = vld [vmem:[%s2 + $0x14] sm:$0xf]
          %v704 = vld [vmem:[%s2 + $0x18] sm:$0xf]
          %v705 = vld [vmem:[%s2 + $0x1c] sm:$0xf]
          %v706 = vld [vmem:[%s2 + $0x20] sm:$0xf]
          %v707 = vld [vmem:[%s2 + $0x24] sm:$0xf]
          %s708 = scalar_lea.vmem [#allocation3], 8
          %v709 = vld [vmem:[%s708] sm:$0xff]
          %v710 = vpack.c.bf16 %v709, %v709
          %v711 = vld [vmem:[#allocation6] sm:$0xf]
          %v712 = vld [vmem:[#allocation6 + $0x4] sm:$0xf]
          %v713 = vld [vmem:[#allocation6 + $0x8] sm:$0xf]
          %v714 = vld [vmem:[#allocation6 + $0xc] sm:$0xf]
          %v715 = vld [vmem:[#allocation6 + $0x10] sm:$0xf]
          %v716 = vld [vmem:[#allocation6 + $0x14] sm:$0xf]
          %v717 = vld [vmem:[#allocation6 + $0x18] sm:$0xf]
          %v718 = vld [vmem:[#allocation6 + $0x1c] sm:$0xf]
          %v719 = vld [vmem:[#allocation6 + $0x20] sm:$0xf]
          %v720 = vld [vmem:[#allocation6 + $0x24] sm:$0xf]
          %v721 = vld [vmem:[#allocation6 + $0x28] sm:$0xf]
          %v722 = vld [vmem:[#allocation6 + $0x2c] sm:$0xf]
          %v723 = vld [vmem:[#allocation6 + $0x30] sm:$0xf]
          %v724 = vld [vmem:[#allocation6 + $0x34] sm:$0xf]
          %v725 = vld [vmem:[#allocation6 + $0x38] sm:$0xf]
          %v726 = vld [vmem:[#allocation6 + $0x3c] sm:$0xf]
          %v727 = vld [vmem:[#allocation8] sm:$0x1]
          %v728 = vlaneseq
          %v729 = vshrl.u32 %v728, 7
          %v730 = vsub.s32 0, %v729
          %v731 = vrot.slane %v727, %v730
          %v748 = vunpack.c.l.b16 %v711
          %v749 = vunpack.c.l.b16 %v712
          %v750 = vunpack.c.l.b16 %v713
          %v751 = vunpack.c.l.b16 %v714
          %v752 = vunpack.c.l.b16 %v715
          %v753 = vunpack.c.l.b16 %v716
          %v754 = vunpack.c.l.b16 %v717
          %v755 = vunpack.c.l.b16 %v718
          %v756 = vunpack.c.l.b16 %v719
          %v757 = vunpack.c.l.b16 %v720
          %v758 = vunpack.c.l.b16 %v721
          %v759 = vunpack.c.l.b16 %v722
          %v760 = vunpack.c.l.b16 %v723
          %v761 = vunpack.c.l.b16 %v724
          %v762 = vunpack.c.l.b16 %v725
          %v763 = vunpack.c.l.b16 %v726
          %v764 = vpack.c.b16 %v749, %v748
          %v765 = vpack.c.b16 %v751, %v750
          %v766 = vpack.c.b16 %v753, %v752
          %v767 = vpack.c.b16 %v755, %v754
          %v768 = vpack.c.b16 %v757, %v756
          %v769 = vpack.c.b16 %v759, %v758
          %v770 = vpack.c.b16 %v761, %v760
          %v771 = vpack.c.b16 %v763, %v762
          %780 = vmatprep.subr.bf16.mxu0 0
          %781 = vmatpush1.bf16.msra.mxu0 %v764
          %782 = vmatprep.subr.bf16.mxu0 0
          %783 = vmatpush1.bf16.msra.mxu0 %v765
          %784 = vmatprep.subr.bf16.mxu0 0
          %785 = vmatpush1.bf16.msra.mxu0 %v766
          %786 = vmatprep.subr.bf16.mxu0 0
          %787 = vmatpush1.bf16.msra.mxu0 %v767
          %788 = vmatprep.subr.bf16.mxu0 0
          %789 = vmatpush1.bf16.msra.mxu0 %v768
          %790 = vmatprep.subr.bf16.mxu0 0
          %791 = vmatpush1.bf16.msra.mxu0 %v769
          %792 = vmatprep.subr.bf16.mxu0 0
          %793 = vmatpush1.bf16.msra.mxu0 %v770
          %794 = vmatprep.subr.bf16.mxu0 0
          %795 = vmatpush1.bf16.msra.mxu0 %v771
          %796 = vmatprep.subr.bf16.mxu0 0
          %797 = vmatpush1.bf16.msra.mxu0 0
          %798 = vmatprep.subr.bf16.mxu0 0
          %799 = vmatpush1.bf16.msra.mxu0 0
          %800 = vmatprep.subr.bf16.mxu0 0
          %801 = vmatpush1.bf16.msra.mxu0 0
          %802 = vmatprep.subr.bf16.mxu0 0
          %803 = vmatpush1.bf16.msra.mxu0 0
          %804 = vmatprep.subr.bf16.mxu0 0
          %805 = vmatpush1.bf16.msra.mxu0 0
          %806 = vmatprep.subr.bf16.mxu0 0
          %807 = vmatpush1.bf16.msra.mxu0 0
          %808 = vmatprep.subr.bf16.mxu0 0
          %809 = vmatpush1.bf16.msra.mxu0 0
          %810 = vmatprep.subr.bf16.mxu0 0
          %811 = vmatpush1.bf16.msra.mxu0 0
          %812 = vmatprep.mubr.bf16.mxu0 0
          %813 = vmatmul.mubr.bf16.gmra.mrb[0].mxu0 %v710
          %v814 = vpop.f32.mrb[0].mxu0
          %v815 = vadd.f32 %v731, %v814
          %v816 = vpop.f32.mrb[0].mxu0
          %v817 = vpop.f32.mrb[0].mxu0
          %v818 = vpop.f32.mrb[0].mxu0
          %819 = vdwg.mxu0
          %v820 = vld [vmem:[#allocation6 + $0x40] sm:$0xf]
          %v821 = vld [vmem:[#allocation6 + $0x44] sm:$0xf]
          %v822 = vld [vmem:[#allocation6 + $0x48] sm:$0xf]
          %v823 = vld [vmem:[#allocation6 + $0x4c] sm:$0xf]
          %v824 = vld [vmem:[#allocation6 + $0x50] sm:$0xf]
          %v825 = vld [vmem:[#allocation6 + $0x54] sm:$0xf]
          %v826 = vld [vmem:[#allocation6 + $0x58] sm:$0xf]
          %v827 = vld [vmem:[#allocation6 + $0x5c] sm:$0xf]
          %v838 = vunpack.c.l.b16 %v698
          %v839 = vunpack.c.l.b16 %v699
          %v840 = vunpack.c.l.b16 %v700
          %v841 = vunpack.c.l.b16 %v701
          %v842 = vunpack.c.l.b16 %v702
          %v843 = vunpack.c.l.b16 %v703
          %v844 = vunpack.c.l.b16 %v704
          %v845 = vunpack.c.l.b16 %v705
          %v846 = vunpack.c.l.b16 %v706
          %v847 = vunpack.c.l.b16 %v707
          %v848 = vpack.c.b16 %v839, %v838
          %v849 = vpack.c.b16 %v841, %v840
          %v850 = vpack.c.b16 %v843, %v842
          %v851 = vpack.c.b16 %v845, %v844
          %v852 = vpack.c.b16 %v847, %v846
          %v861 = vunpack.c.l.b16 %v820
          %v862 = vunpack.c.l.b16 %v821
          %v863 = vunpack.c.l.b16 %v822
          %v864 = vunpack.c.l.b16 %v823
          %v865 = vunpack.c.l.b16 %v824
          %v866 = vunpack.c.l.b16 %v825
          %v867 = vunpack.c.l.b16 %v826
          %v868 = vunpack.c.l.b16 %v827
          %v869 = vpack.c.b16 %v862, %v861
          %v870 = vpack.c.b16 %v864, %v863
          %v871 = vpack.c.b16 %v866, %v865
          %v872 = vpack.c.b16 %v868, %v867
          %vm877 = vcmask 523264
          %v879 = vsel %vm877, %v848, 0
          %v882 = vsel %vm877, %v849, 0
          %v885 = vsel %vm877, %v850, 0
          %v888 = vsel %vm877, %v851, 0
          %v891 = vsel %vm877, %v852, 0
          %893 = vmatprep.subr.bf16.mxu0 0
          %894 = vmatpush1.bf16.msra.mxu0 %v869
          %895 = vmatprep.subr.bf16.mxu0 0
          %896 = vmatpush1.bf16.msra.mxu0 %v870
          %897 = vmatprep.subr.bf16.mxu0 0
          %898 = vmatpush1.bf16.msra.mxu0 %v871
          %899 = vmatprep.subr.bf16.mxu0 0
          %900 = vmatpush1.bf16.msra.mxu0 %v872
          %901 = vmatprep.subr.bf16.mxu0 0
          %902 = vmatpush1.bf16.msra.mxu0 0
          %903 = vmatprep.subr.bf16.mxu0 0
          %904 = vmatpush1.bf16.msra.mxu0 0
          %905 = vmatprep.subr.bf16.mxu0 0
          %906 = vmatpush1.bf16.msra.mxu0 0
          %907 = vmatprep.subr.bf16.mxu0 0
          %908 = vmatpush1.bf16.msra.mxu0 0
          %909 = vmatprep.subr.bf16.mxu0 0
          %910 = vmatpush1.bf16.msra.mxu0 0
          %911 = vmatprep.subr.bf16.mxu0 0
          %912 = vmatpush1.bf16.msra.mxu0 0
          %913 = vmatprep.subr.bf16.mxu0 0
          %914 = vmatpush1.bf16.msra.mxu0 0
          %915 = vmatprep.subr.bf16.mxu0 0
          %916 = vmatpush1.bf16.msra.mxu0 0
          %917 = vmatprep.subr.bf16.mxu0 0
          %918 = vmatpush1.bf16.msra.mxu0 0
          %919 = vmatprep.subr.bf16.mxu0 0
          %920 = vmatpush1.bf16.msra.mxu0 0
          %921 = vmatprep.subr.bf16.mxu0 0
          %922 = vmatpush1.bf16.msra.mxu0 0
          %923 = vmatprep.subr.bf16.mxu0 0
          %924 = vmatpush1.bf16.msra.mxu0 0
          %925 = vmatprep.mubr.bf16.mxu0 0
          %926 = vmatmul.mubr.bf16.gmra.mrb[0].mxu0 %v879
          %v927 = vpop.f32.mrb[0].mxu0
          %v928 = vadd.f32 0.0, %v927
          %v929 = vpop.f32.mrb[0].mxu0
          %v930 = vpop.f32.mrb[0].mxu0
          %v931 = vadd.f32 0.0, %v930
          %v932 = vpop.f32.mrb[0].mxu0
          %933 = vmatprep.mubr.bf16.mxu0 0
          %934 = vmatmul.mubr.bf16.gmra.mrb[0].mxu0 %v882
          %v935 = vpop.f32.mrb[0].mxu0
          %v936 = vadd.f32 0.0, %v935
          %v937 = vpop.f32.mrb[0].mxu0
          %v938 = vpop.f32.mrb[0].mxu0
          %v939 = vadd.f32 0.0, %v938
          %v940 = vpop.f32.mrb[0].mxu0
          %941 = vmatprep.mubr.bf16.mxu0 0
          %942 = vmatmul.mubr.bf16.gmra.mrb[0].mxu0 %v885
          %v943 = vpop.f32.mrb[0].mxu0
          %v944 = vadd.f32 0.0, %v943
          %v945 = vpop.f32.mrb[0].mxu0
          %v946 = vpop.f32.mrb[0].mxu0
          %v947 = vadd.f32 0.0, %v946
          %v948 = vpop.f32.mrb[0].mxu0
          %949 = vmatprep.mubr.bf16.mxu0 0
          %950 = vmatmul.mubr.bf16.gmra.mrb[0].mxu0 %v888
          %v951 = vpop.f32.mrb[0].mxu0
          %v952 = vadd.f32 0.0, %v951
          %v953 = vpop.f32.mrb[0].mxu0
          %v954 = vpop.f32.mrb[0].mxu0
          %v955 = vadd.f32 0.0, %v954
          %v956 = vpop.f32.mrb[0].mxu0
          %957 = vmatprep.mubr.bf16.mxu0 0
          %958 = vmatmul.mubr.bf16.gmra.mrb[0].mxu0 %v891
          %v959 = vpop.f32.mrb[0].mxu0
          %v960 = vadd.f32 0.0, %v959
          %v961 = vpop.f32.mrb[0].mxu0
          %v962 = vpop.f32.mrb[0].mxu0
          %v963 = vadd.f32 0.0, %v962
          %v964 = vpop.f32.mrb[0].mxu0
          %965 = vdwg.mxu0
          %v966 = vadd.f32 %v928, %v815
          %v967 = vadd.f32 %v931, %v815
          %v968 = vadd.f32 %v936, %v815
          %v969 = vadd.f32 %v939, %v815
          %v970 = vadd.f32 %v944, %v815
          %v971 = vadd.f32 %v947, %v815
          %v972 = vadd.f32 %v952, %v815
          %v973 = vadd.f32 %v955, %v815
          %v974 = vadd.f32 %v960, %v815
          %v975 = vadd.f32 %v963, %v815
          %v976 = vtanh.pop %v966
          %v977 = vtanh.pop %v967
          %v978 = vtanh.pop %v968
          %v979 = vtanh.pop %v969
          %v980 = vtanh.pop %v970
          %v981 = vtanh.pop %v971
          %v982 = vtanh.pop %v972
          %v983 = vtanh.pop %v973
          %v984 = vtanh.pop %v974
          %v985 = vtanh.pop %v975
          %v986 = vld [vmem:[#allocation8 + $0x1] sm:$0x1]
          %v987 = vlaneseq
          %v988 = vshrl.u32 %v987, 7
          %v989 = vsub.s32 0, %v988
          %v990 = vrot.slane %v986, %v989
          %v991 = vmul.f32 %v976, %v990
          %v992 = vmul.f32 %v977, %v990
          %v993 = vmul.f32 %v978, %v990
          %v994 = vmul.f32 %v979, %v990
          %v995 = vmul.f32 %v980, %v990
          %v996 = vmul.f32 %v981, %v990
          %v997 = vmul.f32 %v982, %v990
          %v998 = vmul.f32 %v983, %v990
          %v999 = vmul.f32 %v984, %v990
          %v1000 = vmul.f32 %v985, %v990
          %1001 = vadd.xlane.f32.xlu0 %v991
          %v1002 = vpop.xlane.xlu0 %1001
          %1003 = vadd.xlane.f32.xlu0 %v992
          %v1004 = vpop.xlane.xlu0 %1003
          %1005 = vadd.xlane.f32.xlu0 %v993
          %v1006 = vpop.xlane.xlu0 %1005
          %1007 = vadd.xlane.f32.xlu0 %v994
          %v1008 = vpop.xlane.xlu0 %1007
          %1009 = vadd.xlane.f32.xlu0 %v995
          %v1010 = vpop.xlane.xlu0 %1009
          %1011 = vadd.xlane.f32.xlu0 %v996
          %v1012 = vpop.xlane.xlu0 %1011
          %1013 = vadd.xlane.f32.xlu0 %v997
          %v1014 = vpop.xlane.xlu0 %1013
          %1015 = vadd.xlane.f32.xlu0 %v998
          %v1016 = vpop.xlane.xlu0 %1015
          %1017 = vadd.xlane.f32.xlu0 %v999
          %v1018 = vpop.xlane.xlu0 %1017
          %1019 = vadd.xlane.f32.xlu0 %v1000
          %v1020 = vpop.xlane.xlu0 %1019
          %v1021 = vmax.f32 %v1002, %v1010
          %v1022 = vmax.f32 %v1004, %v1012
          %v1023 = vmax.f32 %v1006, %v1014
          %v1024 = vmax.f32 %v1008, %v1016
          %v1025 = vmax.f32 %v1021, %v1018
          %v1026 = vmax.f32 %v1022, %v1020
          %v1027 = vmax.f32 %v1025, %v1026
          %v1028 = vmax.f32 %v1023, %v1024
          %v1029 = vmax.f32 %v1027, %v1028
          %v1030 = vsub.f32 %v1002, %v1029
          %v1031 = vsub.f32 %v1004, %v1029
          %v1032 = vsub.f32 %v1006, %v1029
          %v1033 = vsub.f32 %v1008, %v1029
          %v1034 = vsub.f32 %v1010, %v1029
          %v1035 = vsub.f32 %v1012, %v1029
          %v1036 = vsub.f32 %v1014, %v1029
          %v1037 = vsub.f32 %v1016, %v1029
          %v1038 = vsub.f32 %v1018, %v1029
          %v1039 = vsub.f32 %v1020, %v1029
          %v1040 = vmul.f32 %v1030, 1.442695
          %v1041 = vpow.pop %v1040
          %v1042 = vmul.f32 %v1031, 1.442695
          %v1043 = vpow.pop %v1042
          %v1044 = vmul.f32 %v1032, 1.442695
          %v1045 = vpow.pop %v1044
          %v1046 = vmul.f32 %v1033, 1.442695
          %v1047 = vpow.pop %v1046
          %v1048 = vmul.f32 %v1034, 1.442695
          %v1049 = vpow.pop %v1048
          %v1050 = vmul.f32 %v1035, 1.442695
          %v1051 = vpow.pop %v1050
          %v1052 = vmul.f32 %v1036, 1.442695
          %v1053 = vpow.pop %v1052
          %v1054 = vmul.f32 %v1037, 1.442695
          %v1055 = vpow.pop %v1054
          %v1056 = vmul.f32 %v1038, 1.442695
          %v1057 = vpow.pop %v1056
          %v1058 = vmul.f32 %v1039, 1.442695
          %v1059 = vpow.pop %v1058
          %v1060 = vadd.f32 %v1041, %v1043
          %v1061 = vadd.f32 %v1060, %v1045
          %v1062 = vadd.f32 %v1061, %v1047
          %v1063 = vadd.f32 %v1062, %v1049
          %v1064 = vadd.f32 %v1063, %v1051
          %v1065 = vadd.f32 %v1064, %v1053
          %v1066 = vadd.f32 %v1065, %v1055
          %v1067 = vadd.f32 %v1066, %v1057
          %v1068 = vadd.f32 %v1067, %v1059
          %v1069 = vrcp.pop %v1068
          %v1070 = vmul.f32 %v1041, %v1069
          %v1071 = vmul.f32 %v1043, %v1069
          %v1072 = vmul.f32 %v1045, %v1069
          %v1073 = vmul.f32 %v1047, %v1069
          %v1074 = vmul.f32 %v1049, %v1069
          %v1075 = vmul.f32 %v1051, %v1069
          %v1076 = vmul.f32 %v1053, %v1069
          %v1077 = vmul.f32 %v1055, %v1069
          %v1078 = vmul.f32 %v1057, %v1069
          %v1079 = vmul.f32 %v1059, %v1069
          %v1080 = vunpack.c.l.bf16 %v698
          %v1081 = vunpack.c.l.bf16 %v699
          %v1082 = vunpack.c.l.bf16 %v700
          %v1083 = vunpack.c.l.bf16 %v701
          %v1084 = vunpack.c.l.bf16 %v702
          %v1085 = vunpack.c.l.bf16 %v703
          %v1086 = vunpack.c.l.bf16 %v704
          %v1087 = vunpack.c.l.bf16 %v705
          %v1088 = vunpack.c.l.bf16 %v706
          %v1089 = vunpack.c.l.bf16 %v707
          %v1090 = vmul.f32 %v1070, %v1080
          %v1091 = vmul.f32 %v1071, %v1081
          %v1092 = vmul.f32 %v1072, %v1082
          %v1093 = vmul.f32 %v1073, %v1083
          %v1094 = vmul.f32 %v1074, %v1084
          %v1095 = vmul.f32 %v1075, %v1085
          %v1096 = vmul.f32 %v1076, %v1086
          %v1097 = vmul.f32 %v1077, %v1087
          %v1098 = vmul.f32 %v1078, %v1088
          %v1099 = vmul.f32 %v1079, %v1089
          %v1100 = vsel %vm877, %v1090, 0.0
          %v1101 = vsel %vm877, %v1091, 0.0
          %v1102 = vadd.f32 %v1100, %v1101
          %v1103 = vsel %vm877, %v1092, 0.0
          %v1104 = vadd.f32 %v1102, %v1103
          %v1105 = vsel %vm877, %v1093, 0.0
          %v1106 = vadd.f32 %v1104, %v1105
          %v1107 = vsel %vm877, %v1094, 0.0
          %v1108 = vadd.f32 %v1106, %v1107
          %v1109 = vsel %vm877, %v1095, 0.0
          %v1110 = vadd.f32 %v1108, %v1109
          %v1111 = vsel %vm877, %v1096, 0.0
          %v1112 = vadd.f32 %v1110, %v1111
          %v1113 = vsel %vm877, %v1097, 0.0
          %v1114 = vadd.f32 %v1112, %v1113
          %v1115 = vsel %vm877, %v1098, 0.0
          %v1116 = vadd.f32 %v1114, %v1115
          %v1117 = vsel %vm877, %v1099, 0.0
          %v1118 = vadd.f32 %v1116, %v1117
          %v1119 = vpack.c.bf16 %v1118, %v1118
          %1121 = vrot.lane.b32.xlu0 %v1119, 32
          %v1122 = vpop.permute.xlu0 %1121
          %vm1123 = vcmask 261120
          %v1126 = vsel %vm1123, %v697, %v1122
          %v1127 = vld [vmem:[#allocation3] sm:$0xff]
          %v1128 = vld [vmem:[#allocation9] sm:$0xff]
          %v1129 = vld [vmem:[#allocation9 + $0x8] sm:$0xf]
          %v1130 = vld [vmem:[#allocation9 + $0xc] sm:$0xff]
          %v1131 = vld [vmem:[#allocation9 + $0x14] sm:$0xf]
          %v1132 = vld [vmem:[#allocation9 + $0x18] sm:$0xff]
          %v1133 = vld [vmem:[#allocation9 + $0x20] sm:$0xf]
          %v1134 = vld [vmem:[#allocation9 + $0x24] sm:$0xff]
          %v1135 = vld [vmem:[#allocation9 + $0x2c] sm:$0xf]
          %v1136 = vld [vmem:[#allocation9 + $0x30] sm:$0xff]
          %v1137 = vld [vmem:[#allocation9 + $0x38] sm:$0xf]
          %v1138 = vld [vmem:[#allocation9 + $0x3c] sm:$0xff]
          %v1139 = vld [vmem:[#allocation9 + $0x44] sm:$0xf]
          %v1140 = vld [vmem:[#allocation9 + $0x48] sm:$0xff]
          %v1141 = vld [vmem:[#allocation9 + $0x50] sm:$0xf]
          %v1142 = vld [vmem:[#allocation9 + $0x54] sm:$0xff]
          %v1143 = vld [vmem:[#allocation9 + $0x5c] sm:$0xf]
          %v1144 = vld [vmem:[#allocation9 + $0x60] sm:$0xff]
          %v1145 = vld [vmem:[#allocation9 + $0x68] sm:$0xf]
          %v1146 = vld [vmem:[#allocation9 + $0x6c] sm:$0xff]
          %v1147 = vld [vmem:[#allocation9 + $0x74] sm:$0xf]
          %v1148 = vld [vmem:[#allocation9 + $0x78] sm:$0xff]
          %v1149 = vld [vmem:[#allocation9 + $0x80] sm:$0xf]
          %v1150 = vld [vmem:[#allocation9 + $0x84] sm:$0xff]
          %v1151 = vld [vmem:[#allocation9 + $0x8c] sm:$0xf]
          %v1152 = vld [vmem:[#allocation12] ss:$4 sm:$0x7]
          %v1154 = vlaneseq
          %v1155 = vshrl.u32 %v1154, 7
          %v1156 = vsub.s32 0, %v1155
          %v1157 = vrot.slane %v1152, %v1156
          %v1158 = vlaneseq
          %v1159 = vshrl.u32 %v1158, 7
          %v1160 = vsub.s32 1, %v1159
          %v1161 = vrot.slane %v1152, %v1160
          %v1162 = vlaneseq
          %v1163 = vshrl.u32 %v1162, 7
          %v1164 = vsub.s32 2, %v1163
          %v1165 = vrot.slane %v1152, %v1164
          %v1193 = vunpack.c.l.b16 %v1128
          %v1194 = vunpack.c.h.b16 %v1128
          %v1195 = vunpack.c.l.b16 %v1129
          %v1196 = vunpack.c.l.b16 %v1130
          %v1197 = vunpack.c.h.b16 %v1130
          %v1198 = vunpack.c.l.b16 %v1131
          %v1199 = vunpack.c.l.b16 %v1132
          %v1200 = vunpack.c.h.b16 %v1132
          %v1201 = vunpack.c.l.b16 %v1133
          %v1202 = vunpack.c.l.b16 %v1134
          %v1203 = vunpack.c.h.b16 %v1134
          %v1204 = vunpack.c.l.b16 %v1135
          %v1205 = vunpack.c.l.b16 %v1136
          %v1206 = vunpack.c.h.b16 %v1136
          %v1207 = vunpack.c.l.b16 %v1137
          %v1208 = vunpack.c.l.b16 %v1138
          %v1209 = vunpack.c.h.b16 %v1138
          %v1210 = vunpack.c.l.b16 %v1139
          %v1211 = vunpack.c.l.b16 %v1140
          %v1212 = vunpack.c.h.b16 %v1140
          %v1213 = vunpack.c.l.b16 %v1141
          %v1214 = vunpack.c.l.b16 %v1142
          %v1215 = vunpack.c.h.b16 %v1142
          %v1216 = vunpack.c.l.b16 %v1143
          %v1217 = vunpack.c.l.b16 %v1144
          %v1218 = vunpack.c.h.b16 %v1144
          %v1219 = vunpack.c.l.b16 %v1145
          %v1220 = vunpack.c.l.b16 %v1146
          %v1221 = vunpack.c.h.b16 %v1146
          %v1222 = vunpack.c.l.b16 %v1147
          %v1223 = vunpack.c.l.b16 %v1148
          %v1224 = vunpack.c.h.b16 %v1148
          %v1225 = vunpack.c.l.b16 %v1149
          %v1226 = vunpack.c.l.b16 %v1150
          %v1227 = vunpack.c.h.b16 %v1150
          %v1228 = vunpack.c.l.b16 %v1151
          %v1229 = vpack.c.b16 %v1196, %v1193
          %v1230 = vpack.c.b16 %v1197, %v1194
          %v1231 = vpack.c.b16 %v1198, %v1195
          %v1232 = vpack.c.b16 %v1202, %v1199
          %v1233 = vpack.c.b16 %v1203, %v1200
          %v1234 = vpack.c.b16 %v1204, %v1201
          %v1235 = vpack.c.b16 %v1208, %v1205
          %v1236 = vpack.c.b16 %v1209, %v1206
          %v1237 = vpack.c.b16 %v1210, %v1207
          %v1238 = vpack.c.b16 %v1214, %v1211
          %v1239 = vpack.c.b16 %v1215, %v1212
          %v1240 = vpack.c.b16 %v1216, %v1213
          %v1241 = vpack.c.b16 %v1220, %v1217
          %v1242 = vpack.c.b16 %v1221, %v1218
          %v1243 = vpack.c.b16 %v1222, %v1219
          %v1244 = vpack.c.b16 %v1226, %v1223
          %v1245 = vpack.c.b16 %v1227, %v1224
          %v1246 = vpack.c.b16 %v1228, %v1225
          %vm1265 = vcmask 785408
          %v1266 = vsel %vm1265, %v1126, 0
          %1268 = vmatprep.subr.bf16.mxu0 %v1230
          %1269 = vmatpush1.bf16.msra.mxu0 %v1229
          %1270 = vmatprep.subr.bf16.mxu0 %v1233
          %1271 = vmatpush1.bf16.msra.mxu0 %v1232
          %1272 = vmatprep.subr.bf16.mxu0 %v1236
          %1273 = vmatpush1.bf16.msra.mxu0 %v1235
          %1274 = vmatprep.subr.bf16.mxu0 %v1239
          %1275 = vmatpush1.bf16.msra.mxu0 %v1238
          %1276 = vmatprep.subr.bf16.mxu0 %v1242
          %1277 = vmatpush1.bf16.msra.mxu0 %v1241
          %1278 = vmatprep.subr.bf16.mxu0 %v1245
          %1279 = vmatpush1.bf16.msra.mxu0 %v1244
          %1280 = vmatprep.subr.bf16.mxu0 0
          %1281 = vmatpush1.bf16.msra.mxu0 0
          %1282 = vmatprep.subr.bf16.mxu0 0
          %1283 = vmatpush1.bf16.msra.mxu0 0
          %1284 = vmatprep.subr.bf16.mxu0 0
          %1285 = vmatpush1.bf16.msra.mxu0 0
          %1286 = vmatprep.subr.bf16.mxu0 0
          %1287 = vmatpush1.bf16.msra.mxu0 0
          %1288 = vmatprep.subr.bf16.mxu0 0
          %1289 = vmatpush1.bf16.msra.mxu0 0
          %1290 = vmatprep.subr.bf16.mxu0 0
          %1291 = vmatpush1.bf16.msra.mxu0 0
          %1292 = vmatprep.subr.bf16.mxu0 0
          %1293 = vmatpush1.bf16.msra.mxu0 0
          %1294 = vmatprep.subr.bf16.mxu0 0
          %1295 = vmatpush1.bf16.msra.mxu0 0
          %1296 = vmatprep.subr.bf16.mxu0 0
          %1297 = vmatpush1.bf16.msra.mxu0 0
          %1298 = vmatprep.subr.bf16.mxu0 0
          %1299 = vmatpush1.bf16.msra.mxu0 0
          %1300 = vmatprep.mubr.bf16.mxu0 0
          %1301 = vmatmul.mubr.bf16.gmra.mrb[0].mxu0 %v1266
          %v1302 = vpop.f32.mrb[0].mxu0
          %v1303 = vadd.f32 %v1157, %v1302
          %v1304 = vpop.f32.mrb[0].mxu0
          %v1305 = vadd.f32 %v1161, %v1304
          %v1306 = vpop.f32.mrb[0].mxu0
          %v1307 = vpop.f32.mrb[0].mxu0
          %1308 = vdwg.mxu0
          %1309 = vmatprep.subr.bf16.mxu0 0
          %1310 = vmatpush1.bf16.msra.mxu0 %v1231
          %1311 = vmatprep.subr.bf16.mxu0 0
          %1312 = vmatpush1.bf16.msra.mxu0 %v1234
          %1313 = vmatprep.subr.bf16.mxu0 0
          %1314 = vmatpush1.bf16.msra.mxu0 %v1237
          %1315 = vmatprep.subr.bf16.mxu0 0
          %1316 = vmatpush1.bf16.msra.mxu0 %v1240
          %1317 = vmatprep.subr.bf16.mxu0 0
          %1318 = vmatpush1.bf16.msra.mxu0 %v1243
          %1319 = vmatprep.subr.bf16.mxu0 0
          %1320 = vmatpush1.bf16.msra.mxu0 %v1246
          %1321 = vmatprep.subr.bf16.mxu0 0
          %1322 = vmatpush1.bf16.msra.mxu0 0
          %1323 = vmatprep.subr.bf16.mxu0 0
          %1324 = vmatpush1.bf16.msra.mxu0 0
          %1325 = vmatprep.subr.bf16.mxu0 0
          %1326 = vmatpush1.bf16.msra.mxu0 0
          %1327 = vmatprep.subr.bf16.mxu0 0
          %1328 = vmatpush1.bf16.msra.mxu0 0
          %1329 = vmatprep.subr.bf16.mxu0 0
          %1330 = vmatpush1.bf16.msra.mxu0 0
          %1331 = vmatprep.subr.bf16.mxu0 0
          %1332 = vmatpush1.bf16.msra.mxu0 0
          %1333 = vmatprep.subr.bf16.mxu0 0
          %1334 = vmatpush1.bf16.msra.mxu0 0
          %1335 = vmatprep.subr.bf16.mxu0 0
          %1336 = vmatpush1.bf16.msra.mxu0 0
          %1337 = vmatprep.subr.bf16.mxu0 0
          %1338 = vmatpush1.bf16.msra.mxu0 0
          %1339 = vmatprep.subr.bf16.mxu0 0
          %1340 = vmatpush1.bf16.msra.mxu0 0
          %1341 = vmatprep.mubr.bf16.mxu0 0
          %1342 = vmatmul.mubr.bf16.gmra.mrb[0].mxu0 %v1266
          %v1343 = vpop.f32.mrb[0].mxu0
          %v1344 = vadd.f32 %v1165, %v1343
          %v1345 = vpop.f32.mrb[0].mxu0
          %v1346 = vpop.f32.mrb[0].mxu0
          %v1347 = vpop.f32.mrb[0].mxu0
          %1348 = vdwg.mxu0
          %v1349 = vpack.c.bf16 %v1127, %v1127
          %v1350 = vld [vmem:[#allocation11] sm:$0xff]
          %v1351 = vld [vmem:[#allocation11 + $0x8] sm:$0xf]
          %v1352 = vld [vmem:[#allocation11 + $0xc] sm:$0xff]
          %v1353 = vld [vmem:[#allocation11 + $0x14] sm:$0xf]
          %v1354 = vld [vmem:[#allocation11 + $0x18] sm:$0xff]
          %v1355 = vld [vmem:[#allocation11 + $0x20] sm:$0xf]
          %v1356 = vld [vmem:[#allocation11 + $0x24] sm:$0xff]
          %v1357 = vld [vmem:[#allocation11 + $0x2c] sm:$0xf]
          %v1358 = vld [vmem:[#allocation11 + $0x30] sm:$0xff]
          %v1359 = vld [vmem:[#allocation11 + $0x38] sm:$0xf]
          %v1360 = vld [vmem:[#allocation11 + $0x3c] sm:$0xff]
          %v1361 = vld [vmem:[#allocation11 + $0x44] sm:$0xf]
          %v1362 = vld [vmem:[#allocation11 + $0x48] sm:$0xff]
          %v1363 = vld [vmem:[#allocation11 + $0x50] sm:$0xf]
          %v1364 = vld [vmem:[#allocation11 + $0x54] sm:$0xff]
          %v1365 = vld [vmem:[#allocation11 + $0x5c] sm:$0xf]
          %v1366 = vld [vmem:[#allocation11 + $0x60] sm:$0xff]
          %v1367 = vld [vmem:[#allocation11 + $0x68] sm:$0xf]
          %v1368 = vld [vmem:[#allocation11 + $0x6c] sm:$0xff]
          %v1369 = vld [vmem:[#allocation11 + $0x74] sm:$0xf]
          %v1370 = vld [vmem:[#allocation11 + $0x78] sm:$0xff]
          %v1371 = vld [vmem:[#allocation11 + $0x80] sm:$0xf]
          %v1372 = vld [vmem:[#allocation11 + $0x84] sm:$0xff]
          %v1373 = vld [vmem:[#allocation11 + $0x8c] sm:$0xf]
          %v1374 = vld [vmem:[#allocation11 + $0x90] sm:$0xff]
          %v1375 = vld [vmem:[#allocation11 + $0x98] sm:$0xf]
          %v1376 = vld [vmem:[#allocation11 + $0x9c] sm:$0xff]
          %v1377 = vld [vmem:[#allocation11 + $0xa4] sm:$0xf]
          %v1378 = vld [vmem:[#allocation11 + $0xa8] sm:$0xff]
          %v1379 = vld [vmem:[#allocation11 + $0xb0] sm:$0xf]
          %v1380 = vld [vmem:[#allocation11 + $0xb4] sm:$0xff]
          %v1381 = vld [vmem:[#allocation11 + $0xbc] sm:$0xf]
          %s1382 = scalar_lea.vmem [#allocation12], 1
          %v1383 = vld [vmem:[%s1382] ss:$4 sm:$0x7]
          %v1385 = vlaneseq
          %v1386 = vshrl.u32 %v1385, 7
          %v1387 = vsub.s32 0, %v1386
          %v1388 = vrot.slane %v1383, %v1387
          %v1389 = vlaneseq
          %v1390 = vshrl.u32 %v1389, 7
          %v1391 = vsub.s32 1, %v1390
          %v1392 = vrot.slane %v1383, %v1391
          %v1393 = vlaneseq
          %v1394 = vshrl.u32 %v1393, 7
          %v1395 = vsub.s32 2, %v1394
          %v1396 = vrot.slane %v1383, %v1395
          %v1432 = vunpack.c.l.b16 %v1350
          %v1433 = vunpack.c.h.b16 %v1350
          %v1434 = vunpack.c.l.b16 %v1351
          %v1435 = vunpack.c.l.b16 %v1352
          %v1436 = vunpack.c.h.b16 %v1352
          %v1437 = vunpack.c.l.b16 %v1353
          %v1438 = vunpack.c.l.b16 %v1354
          %v1439 = vunpack.c.h.b16 %v1354
          %v1440 = vunpack.c.l.b16 %v1355
          %v1441 = vunpack.c.l.b16 %v1356
          %v1442 = vunpack.c.h.b16 %v1356
          %v1443 = vunpack.c.l.b16 %v1357
          %v1444 = vunpack.c.l.b16 %v1358
          %v1445 = vunpack.c.h.b16 %v1358
          %v1446 = vunpack.c.l.b16 %v1359
          %v1447 = vunpack.c.l.b16 %v1360
          %v1448 = vunpack.c.h.b16 %v1360
          %v1449 = vunpack.c.l.b16 %v1361
          %v1450 = vunpack.c.l.b16 %v1362
          %v1451 = vunpack.c.h.b16 %v1362
          %v1452 = vunpack.c.l.b16 %v1363
          %v1453 = vunpack.c.l.b16 %v1364
          %v1454 = vunpack.c.h.b16 %v1364
          %v1455 = vunpack.c.l.b16 %v1365
          %v1456 = vunpack.c.l.b16 %v1366
          %v1457 = vunpack.c.h.b16 %v1366
          %v1458 = vunpack.c.l.b16 %v1367
          %v1459 = vunpack.c.l.b16 %v1368
          %v1460 = vunpack.c.h.b16 %v1368
          %v1461 = vunpack.c.l.b16 %v1369
          %v1462 = vunpack.c.l.b16 %v1370
          %v1463 = vunpack.c.h.b16 %v1370
          %v1464 = vunpack.c.l.b16 %v1371
          %v1465 = vunpack.c.l.b16 %v1372
          %v1466 = vunpack.c.h.b16 %v1372
          %v1467 = vunpack.c.l.b16 %v1373
          %v1468 = vunpack.c.l.b16 %v1374
          %v1469 = vunpack.c.h.b16 %v1374
          %v1470 = vunpack.c.l.b16 %v1375
          %v1471 = vunpack.c.l.b16 %v1376
          %v1472 = vunpack.c.h.b16 %v1376
          %v1473 = vunpack.c.l.b16 %v1377
          %v1474 = vunpack.c.l.b16 %v1378
          %v1475 = vunpack.c.h.b16 %v1378
          %v1476 = vunpack.c.l.b16 %v1379
          %v1477 = vunpack.c.l.b16 %v1380
          %v1478 = vunpack.c.h.b16 %v1380
          %v1479 = vunpack.c.l.b16 %v1381
          %v1480 = vpack.c.b16 %v1435, %v1432
          %v1481 = vpack.c.b16 %v1436, %v1433
          %v1482 = vpack.c.b16 %v1437, %v1434
          %v1483 = vpack.c.b16 %v1441, %v1438
          %v1484 = vpack.c.b16 %v1442, %v1439
          %v1485 = vpack.c.b16 %v1443, %v1440
          %v1486 = vpack.c.b16 %v1447, %v1444
          %v1487 = vpack.c.b16 %v1448, %v1445
          %v1488 = vpack.c.b16 %v1449, %v1446
          %v1489 = vpack.c.b16 %v1453, %v1450
          %v1490 = vpack.c.b16 %v1454, %v1451
          %v1491 = vpack.c.b16 %v1455, %v1452
          %v1492 = vpack.c.b16 %v1459, %v1456
          %v1493 = vpack.c.b16 %v1460, %v1457
          %v1494 = vpack.c.b16 %v1461, %v1458
          %v1495 = vpack.c.b16 %v1465, %v1462
          %v1496 = vpack.c.b16 %v1466, %v1463
          %v1497 = vpack.c.b16 %v1467, %v1464
          %v1498 = vpack.c.b16 %v1471, %v1468
          %v1499 = vpack.c.b16 %v1472, %v1469
          %v1500 = vpack.c.b16 %v1473, %v1470
          %v1501 = vpack.c.b16 %v1477, %v1474
          %v1502 = vpack.c.b16 %v1478, %v1475
          %v1503 = vpack.c.b16 %v1479, %v1476
          %1528 = vmatprep.subr.bf16.mxu0 %v1481
          %1529 = vmatpush1.bf16.msra.mxu0 %v1480
          %1530 = vmatprep.subr.bf16.mxu0 %v1484
          %1531 = vmatpush1.bf16.msra.mxu0 %v1483
          %1532 = vmatprep.subr.bf16.mxu0 %v1487
          %1533 = vmatpush1.bf16.msra.mxu0 %v1486
          %1534 = vmatprep.subr.bf16.mxu0 %v1490
          %1535 = vmatpush1.bf16.msra.mxu0 %v1489
          %1536 = vmatprep.subr.bf16.mxu0 %v1493
          %1537 = vmatpush1.bf16.msra.mxu0 %v1492
          %1538 = vmatprep.subr.bf16.mxu0 %v1496
          %1539 = vmatpush1.bf16.msra.mxu0 %v1495
          %1540 = vmatprep.subr.bf16.mxu0 %v1499
          %1541 = vmatpush1.bf16.msra.mxu0 %v1498
          %1542 = vmatprep.subr.bf16.mxu0 %v1502
          %1543 = vmatpush1.bf16.msra.mxu0 %v1501
          %1544 = vmatprep.subr.bf16.mxu0 0
          %1545 = vmatpush1.bf16.msra.mxu0 0
          %1546 = vmatprep.subr.bf16.mxu0 0
          %1547 = vmatpush1.bf16.msra.mxu0 0
          %1548 = vmatprep.subr.bf16.mxu0 0
          %1549 = vmatpush1.bf16.msra.mxu0 0
          %1550 = vmatprep.subr.bf16.mxu0 0
          %1551 = vmatpush1.bf16.msra.mxu0 0
          %1552 = vmatprep.subr.bf16.mxu0 0
          %1553 = vmatpush1.bf16.msra.mxu0 0
          %1554 = vmatprep.subr.bf16.mxu0 0
          %1555 = vmatpush1.bf16.msra.mxu0 0
          %1556 = vmatprep.subr.bf16.mxu0 0
          %1557 = vmatpush1.bf16.msra.mxu0 0
          %1558 = vmatprep.subr.bf16.mxu0 0
          %1559 = vmatpush1.bf16.msra.mxu0 0
          %1560 = vmatprep.mubr.bf16.mxu0 0
          %1561 = vmatmul.mubr.bf16.gmra.mrb[0].mxu0 %v1349
          %v1562 = vpop.f32.mrb[0].mxu0
          %v1563 = vadd.f32 %v1388, %v1562
          %v1564 = vpop.f32.mrb[0].mxu0
          %v1565 = vadd.f32 %v1392, %v1564
          %v1566 = vpop.f32.mrb[0].mxu0
          %v1567 = vpop.f32.mrb[0].mxu0
          %1568 = vdwg.mxu0
          %1569 = vmatprep.subr.bf16.mxu0 0
          %1570 = vmatpush1.bf16.msra.mxu0 %v1482
          %1571 = vmatprep.subr.bf16.mxu0 0
          %1572 = vmatpush1.bf16.msra.mxu0 %v1485
          %1573 = vmatprep.subr.bf16.mxu0 0
          %1574 = vmatpush1.bf16.msra.mxu0 %v1488
          %1575 = vmatprep.subr.bf16.mxu0 0
          %1576 = vmatpush1.bf16.msra.mxu0 %v1491
          %1577 = vmatprep.subr.bf16.mxu0 0
          %1578 = vmatpush1.bf16.msra.mxu0 %v1494
          %1579 = vmatprep.subr.bf16.mxu0 0
          %1580 = vmatpush1.bf16.msra.mxu0 %v1497
          %1581 = vmatprep.subr.bf16.mxu0 0
          %1582 = vmatpush1.bf16.msra.mxu0 %v1500
          %1583 = vmatprep.subr.bf16.mxu0 0
          %1584 = vmatpush1.bf16.msra.mxu0 %v1503
          %1585 = vmatprep.subr.bf16.mxu0 0
          %1586 = vmatpush1.bf16.msra.mxu0 0
          %1587 = vmatprep.subr.bf16.mxu0 0
          %1588 = vmatpush1.bf16.msra.mxu0 0
          %1589 = vmatprep.subr.bf16.mxu0 0
          %1590 = vmatpush1.bf16.msra.mxu0 0
          %1591 = vmatprep.subr.bf16.mxu0 0
          %1592 = vmatpush1.bf16.msra.mxu0 0
          %1593 = vmatprep.subr.bf16.mxu0 0
          %1594 = vmatpush1.bf16.msra.mxu0 0
          %1595 = vmatprep.subr.bf16.mxu0 0
          %1596 = vmatpush1.bf16.msra.mxu0 0
          %1597 = vmatprep.subr.bf16.mxu0 0
          %1598 = vmatpush1.bf16.msra.mxu0 0
          %1599 = vmatprep.subr.bf16.mxu0 0
          %1600 = vmatpush1.bf16.msra.mxu0 0
          %1601 = vmatprep.mubr.bf16.mxu0 0
          %1602 = vmatmul.mubr.bf16.gmra.mrb[0].mxu0 %v1349
          %v1603 = vpop.f32.mrb[0].mxu0
          %v1604 = vadd.f32 %v1396, %v1603
          %v1605 = vpop.f32.mrb[0].mxu0
          %v1606 = vpop.f32.mrb[0].mxu0
          %v1607 = vpop.f32.mrb[0].mxu0
          %1608 = vdwg.mxu0
          %v1609 = vadd.f32 %v1303, %v1563
          %v1610 = vxor.u32 %v1609, 2147483648
          %v1611 = vmul.f32 %v1610, 1.442695
          %v1612 = vpow.pop %v1611
          %v1613 = vadd.f32 %v1612, 1.0
          %v1614 = vrcp.pop %v1613
          %v1615 = vmul.f32 1.0, %v1614
          %v1616 = vadd.f32 %v1305, %v1565
          %v1617 = vxor.u32 %v1616, 2147483648
          %v1618 = vmul.f32 %v1617, 1.442695
          %v1619 = vpow.pop %v1618
          %v1620 = vadd.f32 %v1619, 1.0
          %v1621 = vrcp.pop %v1620
          %v1622 = vmul.f32 1.0, %v1621
          %v1623 = vmul.f32 %v1615, %v1604
          %v1624 = vadd.f32 %v1344, %v1623
          %v1625 = vtanh.pop %v1624
          %v1626 = vsub.f32 1.0, %v1622
          %v1627 = vmul.f32 %v1626, %v1625
          %v1628 = vmul.f32 %v1622, %v1127
          %v1629 = vadd.f32 %v1627, %v1628
          %1630 = vst [vmem:[#allocation19] sm:$0xff] %v1629
          %v1631 = vld [vmem:[%s708] sm:$0xff]
          %v1632 = vpack.c.bf16 %v1629, %v1629
          %v1633 = vld [vmem:[#allocation14] sm:$0xff]
          %v1634 = vld [vmem:[#allocation14 + $0x8] sm:$0xf]
          %v1635 = vld [vmem:[#allocation14 + $0xc] sm:$0xff]
          %v1636 = vld [vmem:[#allocation14 + $0x14] sm:$0xf]
          %v1637 = vld [vmem:[#allocation14 + $0x18] sm:$0xff]
          %v1638 = vld [vmem:[#allocation14 + $0x20] sm:$0xf]
          %v1639 = vld [vmem:[#allocation14 + $0x24] sm:$0xff]
          %v1640 = vld [vmem:[#allocation14 + $0x2c] sm:$0xf]
          %v1641 = vld [vmem:[#allocation14 + $0x30] sm:$0xff]
          %v1642 = vld [vmem:[#allocation14 + $0x38] sm:$0xf]
          %v1643 = vld [vmem:[#allocation14 + $0x3c] sm:$0xff]
          %v1644 = vld [vmem:[#allocation14 + $0x44] sm:$0xf]
          %v1645 = vld [vmem:[#allocation14 + $0x48] sm:$0xff]
          %v1646 = vld [vmem:[#allocation14 + $0x50] sm:$0xf]
          %v1647 = vld [vmem:[#allocation14 + $0x54] sm:$0xff]
          %v1648 = vld [vmem:[#allocation14 + $0x5c] sm:$0xf]
          %v1649 = vld [vmem:[#allocation14 + $0x60] sm:$0xff]
          %v1650 = vld [vmem:[#allocation14 + $0x68] sm:$0xf]
          %v1651 = vld [vmem:[#allocation14 + $0x6c] sm:$0xff]
          %v1652 = vld [vmem:[#allocation14 + $0x74] sm:$0xf]
          %v1653 = vld [vmem:[#allocation14 + $0x78] sm:$0xff]
          %v1654 = vld [vmem:[#allocation14 + $0x80] sm:$0xf]
          %v1655 = vld [vmem:[#allocation14 + $0x84] sm:$0xff]
          %v1656 = vld [vmem:[#allocation14 + $0x8c] sm:$0xf]
          %v1657 = vld [vmem:[#allocation14 + $0x90] sm:$0xff]
          %v1658 = vld [vmem:[#allocation14 + $0x98] sm:$0xf]
          %v1659 = vld [vmem:[#allocation14 + $0x9c] sm:$0xff]
          %v1660 = vld [vmem:[#allocation14 + $0xa4] sm:$0xf]
          %v1661 = vld [vmem:[#allocation14 + $0xa8] sm:$0xff]
          %v1662 = vld [vmem:[#allocation14 + $0xb0] sm:$0xf]
          %v1663 = vld [vmem:[#allocation14 + $0xb4] sm:$0xff]
          %v1664 = vld [vmem:[#allocation14 + $0xbc] sm:$0xf]
          %s1665 = scalar_lea.vmem [#allocation12], 2
          %v1666 = vld [vmem:[%s1665] ss:$4 sm:$0x7]
          %v1668 = vlaneseq
          %v1669 = vshrl.u32 %v1668, 7
          %v1670 = vsub.s32 0, %v1669
          %v1671 = vrot.slane %v1666, %v1670
          %v1672 = vlaneseq
          %v1673 = vshrl.u32 %v1672, 7
          %v1674 = vsub.s32 1, %v1673
          %v1675 = vrot.slane %v1666, %v1674
          %v1676 = vlaneseq
          %v1677 = vshrl.u32 %v1676, 7
          %v1678 = vsub.s32 2, %v1677
          %v1679 = vrot.slane %v1666, %v1678
          %v1715 = vunpack.c.l.b16 %v1633
          %v1716 = vunpack.c.h.b16 %v1633
          %v1717 = vunpack.c.l.b16 %v1634
          %v1718 = vunpack.c.l.b16 %v1635
          %v1719 = vunpack.c.h.b16 %v1635
          %v1720 = vunpack.c.l.b16 %v1636
          %v1721 = vunpack.c.l.b16 %v1637
          %v1722 = vunpack.c.h.b16 %v1637
          %v1723 = vunpack.c.l.b16 %v1638
          %v1724 = vunpack.c.l.b16 %v1639
          %v1725 = vunpack.c.h.b16 %v1639
          %v1726 = vunpack.c.l.b16 %v1640
          %v1727 = vunpack.c.l.b16 %v1641
          %v1728 = vunpack.c.h.b16 %v1641
          %v1729 = vunpack.c.l.b16 %v1642
          %v1730 = vunpack.c.l.b16 %v1643
          %v1731 = vunpack.c.h.b16 %v1643
          %v1732 = vunpack.c.l.b16 %v1644
          %v1733 = vunpack.c.l.b16 %v1645
          %v1734 = vunpack.c.h.b16 %v1645
          %v1735 = vunpack.c.l.b16 %v1646
          %v1736 = vunpack.c.l.b16 %v1647
          %v1737 = vunpack.c.h.b16 %v1647
          %v1738 = vunpack.c.l.b16 %v1648
          %v1739 = vunpack.c.l.b16 %v1649
          %v1740 = vunpack.c.h.b16 %v1649
          %v1741 = vunpack.c.l.b16 %v1650
          %v1742 = vunpack.c.l.b16 %v1651
          %v1743 = vunpack.c.h.b16 %v1651
          %v1744 = vunpack.c.l.b16 %v1652
          %v1745 = vunpack.c.l.b16 %v1653
          %v1746 = vunpack.c.h.b16 %v1653
          %v1747 = vunpack.c.l.b16 %v1654
          %v1748 = vunpack.c.l.b16 %v1655
          %v1749 = vunpack.c.h.b16 %v1655
          %v1750 = vunpack.c.l.b16 %v1656
          %v1751 = vunpack.c.l.b16 %v1657
          %v1752 = vunpack.c.h.b16 %v1657
          %v1753 = vunpack.c.l.b16 %v1658
          %v1754 = vunpack.c.l.b16 %v1659
          %v1755 = vunpack.c.h.b16 %v1659
          %v1756 = vunpack.c.l.b16 %v1660
          %v1757 = vunpack.c.l.b16 %v1661
          %v1758 = vunpack.c.h.b16 %v1661
          %v1759 = vunpack.c.l.b16 %v1662
          %v1760 = vunpack.c.l.b16 %v1663
          %v1761 = vunpack.c.h.b16 %v1663
          %v1762 = vunpack.c.l.b16 %v1664
          %v1763 = vpack.c.b16 %v1718, %v1715
          %v1764 = vpack.c.b16 %v1719, %v1716
          %v1765 = vpack.c.b16 %v1720, %v1717
          %v1766 = vpack.c.b16 %v1724, %v1721
          %v1767 = vpack.c.b16 %v1725, %v1722
          %v1768 = vpack.c.b16 %v1726, %v1723
          %v1769 = vpack.c.b16 %v1730, %v1727
          %v1770 = vpack.c.b16 %v1731, %v1728
          %v1771 = vpack.c.b16 %v1732, %v1729
          %v1772 = vpack.c.b16 %v1736, %v1733
          %v1773 = vpack.c.b16 %v1737, %v1734
          %v1774 = vpack.c.b16 %v1738, %v1735
          %v1775 = vpack.c.b16 %v1742, %v1739
          %v1776 = vpack.c.b16 %v1743, %v1740
          %v1777 = vpack.c.b16 %v1744, %v1741
          %v1778 = vpack.c.b16 %v1748, %v1745
          %v1779 = vpack.c.b16 %v1749, %v1746
          %v1780 = vpack.c.b16 %v1750, %v1747
          %v1781 = vpack.c.b16 %v1754, %v1751
          %v1782 = vpack.c.b16 %v1755, %v1752
          %v1783 = vpack.c.b16 %v1756, %v1753
          %v1784 = vpack.c.b16 %v1760, %v1757
          %v1785 = vpack.c.b16 %v1761, %v1758
          %v1786 = vpack.c.b16 %v1762, %v1759
          %1811 = vmatprep.subr.bf16.mxu0 %v1764
          %1812 = vmatpush1.bf16.msra.mxu0 %v1763
          %1813 = vmatprep.subr.bf16.mxu0 %v1767
          %1814 = vmatpush1.bf16.msra.mxu0 %v1766
          %1815 = vmatprep.subr.bf16.mxu0 %v1770
          %1816 = vmatpush1.bf16.msra.mxu0 %v1769
          %1817 = vmatprep.subr.bf16.mxu0 %v1773
          %1818 = vmatpush1.bf16.msra.mxu0 %v1772
          %1819 = vmatprep.subr.bf16.mxu0 %v1776
          %1820 = vmatpush1.bf16.msra.mxu0 %v1775
          %1821 = vmatprep.subr.bf16.mxu0 %v1779
          %1822 = vmatpush1.bf16.msra.mxu0 %v1778
          %1823 = vmatprep.subr.bf16.mxu0 %v1782
          %1824 = vmatpush1.bf16.msra.mxu0 %v1781
          %1825 = vmatprep.subr.bf16.mxu0 %v1785
          %1826 = vmatpush1.bf16.msra.mxu0 %v1784
          %1827 = vmatprep.subr.bf16.mxu0 0
          %1828 = vmatpush1.bf16.msra.mxu0 0
          %1829 = vmatprep.subr.bf16.mxu0 0
          %1830 = vmatpush1.bf16.msra.mxu0 0
          %1831 = vmatprep.subr.bf16.mxu0 0
          %1832 = vmatpush1.bf16.msra.mxu0 0
          %1833 = vmatprep.subr.bf16.mxu0 0
          %1834 = vmatpush1.bf16.msra.mxu0 0
          %1835 = vmatprep.subr.bf16.mxu0 0
          %1836 = vmatpush1.bf16.msra.mxu0 0
          %1837 = vmatprep.subr.bf16.mxu0 0
          %1838 = vmatpush1.bf16.msra.mxu0 0
          %1839 = vmatprep.subr.bf16.mxu0 0
          %1840 = vmatpush1.bf16.msra.mxu0 0
          %1841 = vmatprep.subr.bf16.mxu0 0
          %1842 = vmatpush1.bf16.msra.mxu0 0
          %1843 = vmatprep.mubr.bf16.mxu0 0
          %1844 = vmatmul.mubr.bf16.gmra.mrb[0].mxu0 %v1632
          %v1845 = vpop.f32.mrb[0].mxu0
          %v1846 = vadd.f32 %v1671, %v1845
          %v1847 = vpop.f32.mrb[0].mxu0
          %v1848 = vadd.f32 %v1675, %v1847
          %v1849 = vpop.f32.mrb[0].mxu0
          %v1850 = vpop.f32.mrb[0].mxu0
          %1851 = vdwg.mxu0
          %1852 = vmatprep.subr.bf16.mxu0 0
          %1853 = vmatpush1.bf16.msra.mxu0 %v1765
          %1854 = vmatprep.subr.bf16.mxu0 0
          %1855 = vmatpush1.bf16.msra.mxu0 %v1768
          %1856 = vmatprep.subr.bf16.mxu0 0
          %1857 = vmatpush1.bf16.msra.mxu0 %v1771
          %1858 = vmatprep.subr.bf16.mxu0 0
          %1859 = vmatpush1.bf16.msra.mxu0 %v1774
          %1860 = vmatprep.subr.bf16.mxu0 0
          %1861 = vmatpush1.bf16.msra.mxu0 %v1777
          %1862 = vmatprep.subr.bf16.mxu0 0
          %1863 = vmatpush1.bf16.msra.mxu0 %v1780
          %1864 = vmatprep.subr.bf16.mxu0 0
          %1865 = vmatpush1.bf16.msra.mxu0 %v1783
          %1866 = vmatprep.subr.bf16.mxu0 0
          %1867 = vmatpush1.bf16.msra.mxu0 %v1786
          %1868 = vmatprep.subr.bf16.mxu0 0
          %1869 = vmatpush1.bf16.msra.mxu0 0
          %1870 = vmatprep.subr.bf16.mxu0 0
          %1871 = vmatpush1.bf16.msra.mxu0 0
          %1872 = vmatprep.subr.bf16.mxu0 0
          %1873 = vmatpush1.bf16.msra.mxu0 0
          %1874 = vmatprep.subr.bf16.mxu0 0
          %1875 = vmatpush1.bf16.msra.mxu0 0
          %1876 = vmatprep.subr.bf16.mxu0 0
          %1877 = vmatpush1.bf16.msra.mxu0 0
          %1878 = vmatprep.subr.bf16.mxu0 0
          %1879 = vmatpush1.bf16.msra.mxu0 0
          %1880 = vmatprep.subr.bf16.mxu0 0
          %1881 = vmatpush1.bf16.msra.mxu0 0
          %1882 = vmatprep.subr.bf16.mxu0 0
          %1883 = vmatpush1.bf16.msra.mxu0 0
          %1884 = vmatprep.mubr.bf16.mxu0 0
          %1885 = vmatmul.mubr.bf16.gmra.mrb[0].mxu0 %v1632
          %v1886 = vpop.f32.mrb[0].mxu0
          %v1887 = vadd.f32 %v1679, %v1886
          %v1888 = vpop.f32.mrb[0].mxu0
          %v1889 = vpop.f32.mrb[0].mxu0
          %v1890 = vpop.f32.mrb[0].mxu0
          %1891 = vdwg.mxu0
          %v1892 = vpack.c.bf16 %v1631, %v1631
          %s1893 = scalar_lea.vmem [#allocation11], 192
          %v1894 = vld [vmem:[%s1893] sm:$0xff]
          %v1895 = vld [vmem:[%s1893 + $0x8] sm:$0xf]
          %v1896 = vld [vmem:[%s1893 + $0xc] sm:$0xff]
          %v1897 = vld [vmem:[%s1893 + $0x14] sm:$0xf]
          %v1898 = vld [vmem:[%s1893 + $0x18] sm:$0xff]
          %v1899 = vld [vmem:[%s1893 + $0x20] sm:$0xf]
          %v1900 = vld [vmem:[%s1893 + $0x24] sm:$0xff]
          %v1901 = vld [vmem:[%s1893 + $0x2c] sm:$0xf]
          %v1902 = vld [vmem:[%s1893 + $0x30] sm:$0xff]
          %v1903 = vld [vmem:[%s1893 + $0x38] sm:$0xf]
          %v1904 = vld [vmem:[%s1893 + $0x3c] sm:$0xff]
          %v1905 = vld [vmem:[%s1893 + $0x44] sm:$0xf]
          %v1906 = vld [vmem:[%s1893 + $0x48] sm:$0xff]
          %v1907 = vld [vmem:[%s1893 + $0x50] sm:$0xf]
          %v1908 = vld [vmem:[%s1893 + $0x54] sm:$0xff]
          %v1909 = vld [vmem:[%s1893 + $0x5c] sm:$0xf]
          %v1910 = vld [vmem:[%s1893 + $0x60] sm:$0xff]
          %v1911 = vld [vmem:[%s1893 + $0x68] sm:$0xf]
          %v1912 = vld [vmem:[%s1893 + $0x6c] sm:$0xff]
          %v1913 = vld [vmem:[%s1893 + $0x74] sm:$0xf]
          %v1914 = vld [vmem:[%s1893 + $0x78] sm:$0xff]
          %v1915 = vld [vmem:[%s1893 + $0x80] sm:$0xf]
          %v1916 = vld [vmem:[%s1893 + $0x84] sm:$0xff]
          %v1917 = vld [vmem:[%s1893 + $0x8c] sm:$0xf]
          %v1918 = vld [vmem:[%s1893 + $0x90] sm:$0xff]
          %v1919 = vld [vmem:[%s1893 + $0x98] sm:$0xf]
          %v1920 = vld [vmem:[%s1893 + $0x9c] sm:$0xff]
          %v1921 = vld [vmem:[%s1893 + $0xa4] sm:$0xf]
          %v1922 = vld [vmem:[%s1893 + $0xa8] sm:$0xff]
          %v1923 = vld [vmem:[%s1893 + $0xb0] sm:$0xf]
          %v1924 = vld [vmem:[%s1893 + $0xb4] sm:$0xff]
          %v1925 = vld [vmem:[%s1893 + $0xbc] sm:$0xf]
          %s1926 = scalar_lea.vmem [#allocation12], 3
          %v1927 = vld [vmem:[%s1926] ss:$4 sm:$0x7]
          %v1929 = vlaneseq
          %v1930 = vshrl.u32 %v1929, 7
          %v1931 = vsub.s32 0, %v1930
          %v1932 = vrot.slane %v1927, %v1931
          %v1933 = vlaneseq
          %v1934 = vshrl.u32 %v1933, 7
          %v1935 = vsub.s32 1, %v1934
          %v1936 = vrot.slane %v1927, %v1935
          %v1937 = vlaneseq
          %v1938 = vshrl.u32 %v1937, 7
          %v1939 = vsub.s32 2, %v1938
          %v1940 = vrot.slane %v1927, %v1939
          %v1976 = vunpack.c.l.b16 %v1894
          %v1977 = vunpack.c.h.b16 %v1894
          %v1978 = vunpack.c.l.b16 %v1895
          %v1979 = vunpack.c.l.b16 %v1896
          %v1980 = vunpack.c.h.b16 %v1896
          %v1981 = vunpack.c.l.b16 %v1897
          %v1982 = vunpack.c.l.b16 %v1898
          %v1983 = vunpack.c.h.b16 %v1898
          %v1984 = vunpack.c.l.b16 %v1899
          %v1985 = vunpack.c.l.b16 %v1900
          %v1986 = vunpack.c.h.b16 %v1900
          %v1987 = vunpack.c.l.b16 %v1901
          %v1988 = vunpack.c.l.b16 %v1902
          %v1989 = vunpack.c.h.b16 %v1902
          %v1990 = vunpack.c.l.b16 %v1903
          %v1991 = vunpack.c.l.b16 %v1904
          %v1992 = vunpack.c.h.b16 %v1904
          %v1993 = vunpack.c.l.b16 %v1905
          %v1994 = vunpack.c.l.b16 %v1906
          %v1995 = vunpack.c.h.b16 %v1906
          %v1996 = vunpack.c.l.b16 %v1907
          %v1997 = vunpack.c.l.b16 %v1908
          %v1998 = vunpack.c.h.b16 %v1908
          %v1999 = vunpack.c.l.b16 %v1909
          %v2000 = vunpack.c.l.b16 %v1910
          %v2001 = vunpack.c.h.b16 %v1910
          %v2002 = vunpack.c.l.b16 %v1911
          %v2003 = vunpack.c.l.b16 %v1912
          %v2004 = vunpack.c.h.b16 %v1912
          %v2005 = vunpack.c.l.b16 %v1913
          %v2006 = vunpack.c.l.b16 %v1914
          %v2007 = vunpack.c.h.b16 %v1914
          %v2008 = vunpack.c.l.b16 %v1915
          %v2009 = vunpack.c.l.b16 %v1916
          %v2010 = vunpack.c.h.b16 %v1916
          %v2011 = vunpack.c.l.b16 %v1917
          %v2012 = vunpack.c.l.b16 %v1918
          %v2013 = vunpack.c.h.b16 %v1918
          %v2014 = vunpack.c.l.b16 %v1919
          %v2015 = vunpack.c.l.b16 %v1920
          %v2016 = vunpack.c.h.b16 %v1920
          %v2017 = vunpack.c.l.b16 %v1921
          %v2018 = vunpack.c.l.b16 %v1922
          %v2019 = vunpack.c.h.b16 %v1922
          %v2020 = vunpack.c.l.b16 %v1923
          %v2021 = vunpack.c.l.b16 %v1924
          %v2022 = vunpack.c.h.b16 %v1924
          %v2023 = vunpack.c.l.b16 %v1925
          %v2024 = vpack.c.b16 %v1979, %v1976
          %v2025 = vpack.c.b16 %v1980, %v1977
          %v2026 = vpack.c.b16 %v1981, %v1978
          %v2027 = vpack.c.b16 %v1985, %v1982
          %v2028 = vpack.c.b16 %v1986, %v1983
          %v2029 = vpack.c.b16 %v1987, %v1984
          %v2030 = vpack.c.b16 %v1991, %v1988
          %v2031 = vpack.c.b16 %v1992, %v1989
          %v2032 = vpack.c.b16 %v1993, %v1990
          %v2033 = vpack.c.b16 %v1997, %v1994
          %v2034 = vpack.c.b16 %v1998, %v1995
          %v2035 = vpack.c.b16 %v1999, %v1996
          %v2036 = vpack.c.b16 %v2003, %v2000
          %v2037 = vpack.c.b16 %v2004, %v2001
          %v2038 = vpack.c.b16 %v2005, %v2002
          %v2039 = vpack.c.b16 %v2009, %v2006
          %v2040 = vpack.c.b16 %v2010, %v2007
          %v2041 = vpack.c.b16 %v2011, %v2008
          %v2042 = vpack.c.b16 %v2015, %v2012
          %v2043 = vpack.c.b16 %v2016, %v2013
          %v2044 = vpack.c.b16 %v2017, %v2014
          %v2045 = vpack.c.b16 %v2021, %v2018
          %v2046 = vpack.c.b16 %v2022, %v2019
          %v2047 = vpack.c.b16 %v2023, %v2020
          %2072 = vmatprep.subr.bf16.mxu0 %v2025
          %2073 = vmatpush1.bf16.msra.mxu0 %v2024
          %2074 = vmatprep.subr.bf16.mxu0 %v2028
          %2075 = vmatpush1.bf16.msra.mxu0 %v2027
          %2076 = vmatprep.subr.bf16.mxu0 %v2031
          %2077 = vmatpush1.bf16.msra.mxu0 %v2030
          %2078 = vmatprep.subr.bf16.mxu0 %v2034
          %2079 = vmatpush1.bf16.msra.mxu0 %v2033
          %2080 = vmatprep.subr.bf16.mxu0 %v2037
          %2081 = vmatpush1.bf16.msra.mxu0 %v2036
          %2082 = vmatprep.subr.bf16.mxu0 %v2040
          %2083 = vmatpush1.bf16.msra.mxu0 %v2039
          %2084 = vmatprep.subr.bf16.mxu0 %v2043
          %2085 = vmatpush1.bf16.msra.mxu0 %v2042
          %2086 = vmatprep.subr.bf16.mxu0 %v2046
          %2087 = vmatpush1.bf16.msra.mxu0 %v2045
          %2088 = vmatprep.subr.bf16.mxu0 0
          %2089 = vmatpush1.bf16.msra.mxu0 0
          %2090 = vmatprep.subr.bf16.mxu0 0
          %2091 = vmatpush1.bf16.msra.mxu0 0
          %2092 = vmatprep.subr.bf16.mxu0 0
          %2093 = vmatpush1.bf16.msra.mxu0 0
          %2094 = vmatprep.subr.bf16.mxu0 0
          %2095 = vmatpush1.bf16.msra.mxu0 0
          %2096 = vmatprep.subr.bf16.mxu0 0
          %2097 = vmatpush1.bf16.msra.mxu0 0
          %2098 = vmatprep.subr.bf16.mxu0 0
          %2099 = vmatpush1.bf16.msra.mxu0 0
          %2100 = vmatprep.subr.bf16.mxu0 0
          %2101 = vmatpush1.bf16.msra.mxu0 0
          %2102 = vmatprep.subr.bf16.mxu0 0
          %2103 = vmatpush1.bf16.msra.mxu0 0
          %2104 = vmatprep.mubr.bf16.mxu0 0
          %2105 = vmatmul.mubr.bf16.gmra.mrb[0].mxu0 %v1892
          %v2106 = vpop.f32.mrb[0].mxu0
          %v2107 = vadd.f32 %v1932, %v2106
          %v2108 = vpop.f32.mrb[0].mxu0
          %v2109 = vadd.f32 %v1936, %v2108
          %v2110 = vpop.f32.mrb[0].mxu0
          %v2111 = vpop.f32.mrb[0].mxu0
          %2112 = vdwg.mxu0
          %2113 = vmatprep.subr.bf16.mxu0 0
          %2114 = vmatpush1.bf16.msra.mxu0 %v2026
          %2115 = vmatprep.subr.bf16.mxu0 0
          %2116 = vmatpush1.bf16.msra.mxu0 %v2029
          %2117 = vmatprep.subr.bf16.mxu0 0
          %2118 = vmatpush1.bf16.msra.mxu0 %v2032
          %2119 = vmatprep.subr.bf16.mxu0 0
          %2120 = vmatpush1.bf16.msra.mxu0 %v2035
          %2121 = vmatprep.subr.bf16.mxu0 0
          %2122 = vmatpush1.bf16.msra.mxu0 %v2038
          %2123 = vmatprep.subr.bf16.mxu0 0
          %2124 = vmatpush1.bf16.msra.mxu0 %v2041
          %2125 = vmatprep.subr.bf16.mxu0 0
          %2126 = vmatpush1.bf16.msra.mxu0 %v2044
          %2127 = vmatprep.subr.bf16.mxu0 0
          %2128 = vmatpush1.bf16.msra.mxu0 %v2047
          %2129 = vmatprep.subr.bf16.mxu0 0
          %2130 = vmatpush1.bf16.msra.mxu0 0
          %2131 = vmatprep.subr.bf16.mxu0 0
          %2132 = vmatpush1.bf16.msra.mxu0 0
          %2133 = vmatprep.subr.bf16.mxu0 0
          %2134 = vmatpush1.bf16.msra.mxu0 0
          %2135 = vmatprep.subr.bf16.mxu0 0
          %2136 = vmatpush1.bf16.msra.mxu0 0
          %2137 = vmatprep.subr.bf16.mxu0 0
          %2138 = vmatpush1.bf16.msra.mxu0 0
          %2139 = vmatprep.subr.bf16.mxu0 0
          %2140 = vmatpush1.bf16.msra.mxu0 0
          %2141 = vmatprep.subr.bf16.mxu0 0
          %2142 = vmatpush1.bf16.msra.mxu0 0
          %2143 = vmatprep.subr.bf16.mxu0 0
          %2144 = vmatpush1.bf16.msra.mxu0 0
          %2145 = vmatprep.mubr.bf16.mxu0 0
          %2146 = vmatmul.mubr.bf16.gmra.mrb[0].mxu0 %v1892
          %v2147 = vpop.f32.mrb[0].mxu0
          %v2148 = vadd.f32 %v1940, %v2147
          %v2149 = vpop.f32.mrb[0].mxu0
          %v2150 = vpop.f32.mrb[0].mxu0
          %v2151 = vpop.f32.mrb[0].mxu0
          %2152 = vdwg.mxu0
          %v2153 = vadd.f32 %v1846, %v2107
          %v2154 = vxor.u32 %v2153, 2147483648
          %v2155 = vmul.f32 %v2154, 1.442695
          %v2156 = vpow.pop %v2155
          %v2157 = vadd.f32 %v2156, 1.0
          %v2158 = vrcp.pop %v2157
          %v2159 = vmul.f32 1.0, %v2158
          %v2160 = vadd.f32 %v1848, %v2109
          %v2161 = vxor.u32 %v2160, 2147483648
          %v2162 = vmul.f32 %v2161, 1.442695
          %v2163 = vpow.pop %v2162
          %v2164 = vadd.f32 %v2163, 1.0
          %v2165 = vrcp.pop %v2164
          %v2166 = vmul.f32 1.0, %v2165
          %v2167 = vmul.f32 %v2159, %v2148
          %v2168 = vadd.f32 %v1887, %v2167
          %v2169 = vtanh.pop %v2168
          %v2170 = vsub.f32 1.0, %v2166
          %v2171 = vmul.f32 %v2170, %v2169
          %v2172 = vmul.f32 %v2166, %v1631
          %v2173 = vadd.f32 %v2171, %v2172
          %s2174 = scalar_lea.vmem [#allocation19], 8
          %2175 = vst [vmem:[%s2174] sm:$0xff] %v2173
          %v2176 = vpack.c.bf16 %v2173, %v2173
          %v2178 = vunpack.c.l.b16 %v697
          %v2179 = vpack.c.b16 %v2178, %v2178
          %2180 = vrot.lane.b32.xlu0 %v2179, 64
          %v2181 = vpop.permute.xlu0 %2180
          %v2184 = vsel %vm877, %v1119, %v2181
          %v2187 = vunpack.c.l.b16 %v2176
          %v2188 = vunpack.c.l.b16 %v2184
          %v2189 = vpack.c.b16 %v2188, %v2187
          %vm2191 = vcmask 1043456
          %vm2192 = vcmask 785412
          %vm2193 = vmor %vm2192, %vm2191
          %2194 = vst.msk [vmem:[#allocation2] sm:$0xff] %vm2193, %v2189
        $region141: #{decoder_step.1} parent=100 // pred_fallthru
          _
        %v2195 = vld [vmem:[#allocation2] sm:$0xff]
        %v2196 = vld [vmem:[%s641] sm:$0xf]
        %v2197 = vld [vmem:[%s641 + $0x4] sm:$0xf]
        %v2198 = vld [vmem:[%s641 + $0x8] sm:$0xf]
        %v2199 = vld [vmem:[%s641 + $0xc] sm:$0xf]
        %v2200 = vld [vmem:[%s641 + $0x10] sm:$0xf]
        %v2201 = vld [vmem:[%s641 + $0x14] sm:$0xf]
        %v2202 = vld [vmem:[%s641 + $0x18] sm:$0xf]
        %v2203 = vld [vmem:[%s641 + $0x1c] sm:$0xf]
        %v2204 = vld [vmem:[%s641 + $0x20] sm:$0xf]
        %v2205 = vld [vmem:[%s641 + $0x24] sm:$0xf]
        %v2206 = vld [vmem:[%s641 + $0x28] sm:$0xf]
        %v2207 = vld [vmem:[%s641 + $0x2c] sm:$0xf]
        %v2208 = vld [vmem:[%s641 + $0x30] sm:$0xf]
        %v2209 = vld [vmem:[%s641 + $0x34] sm:$0xf]
        %v2210 = vld [vmem:[%s641 + $0x38] sm:$0xf]
        %v2211 = vld [vmem:[%s641 + $0x3c] sm:$0xf]
        %v2212 = vld [vmem:[%s641 + $0x40] sm:$0xf]
        %v2213 = vld [vmem:[%s641 + $0x44] sm:$0xf]
        %v2214 = vld [vmem:[%s641 + $0x48] sm:$0xf]
        %v2215 = vld [vmem:[%s641 + $0x4c] sm:$0xf]
        %v2216 = vld [vmem:[%s641 + $0x50] sm:$0xf]
        %v2217 = vld [vmem:[%s641 + $0x54] sm:$0xf]
        %v2218 = vld [vmem:[%s641 + $0x58] sm:$0xf]
        %v2219 = vld [vmem:[%s641 + $0x5c] sm:$0xf]
        %v2220 = vld [vmem:[%s641 + $0x60] sm:$0xf]
        %v2221 = vld [vmem:[%s641 + $0x64] sm:$0xf]
        %v2222 = vld [vmem:[%s641 + $0x68] sm:$0xf]
        %v2223 = vld [vmem:[%s641 + $0x6c] sm:$0xf]
        %v2224 = vld [vmem:[%s648] sm:$0x1]
        %v2226 = vlaneseq
        %v2227 = vshrl.u32 %v2226, 7
        %v2228 = vsub.s32 0, %v2227
        %v2229 = vrot.slane %v2224, %v2228
        %v2232 = vunpack.c.l.b16 %v2195
        %v2233 = vunpack.c.h.b16 %v2195
        %v2234 = vpack.c.b16 %v2232, %v2232
        %v2235 = vpack.c.b16 %v2233, %v2233
        %v2265 = vunpack.c.l.b16 %v2196
        %v2266 = vunpack.c.l.b16 %v2197
        %v2267 = vunpack.c.l.b16 %v2198
        %v2268 = vunpack.c.l.b16 %v2199
        %v2269 = vunpack.c.l.b16 %v2200
        %v2270 = vunpack.c.l.b16 %v2201
        %v2271 = vunpack.c.l.b16 %v2202
        %v2272 = vunpack.c.l.b16 %v2203
        %v2273 = vunpack.c.l.b16 %v2204
        %v2274 = vunpack.c.l.b16 %v2205
        %v2275 = vunpack.c.l.b16 %v2206
        %v2276 = vunpack.c.l.b16 %v2207
        %v2277 = vunpack.c.l.b16 %v2208
        %v2278 = vunpack.c.l.b16 %v2209
        %v2279 = vunpack.c.l.b16 %v2210
        %v2280 = vunpack.c.l.b16 %v2211
        %v2281 = vunpack.c.l.b16 %v2212
        %v2282 = vunpack.c.l.b16 %v2213
        %v2283 = vunpack.c.l.b16 %v2214
        %v2284 = vunpack.c.l.b16 %v2215
        %v2285 = vunpack.c.l.b16 %v2216
        %v2286 = vunpack.c.l.b16 %v2217
        %v2287 = vunpack.c.l.b16 %v2218
        %v2288 = vunpack.c.l.b16 %v2219
        %v2289 = vunpack.c.l.b16 %v2220
        %v2290 = vunpack.c.l.b16 %v2221
        %v2291 = vunpack.c.l.b16 %v2222
        %v2292 = vunpack.c.l.b16 %v2223
        %v2293 = vpack.c.b16 %v2266, %v2265
        %v2294 = vpack.c.b16 %v2268, %v2267
        %v2295 = vpack.c.b16 %v2270, %v2269
        %v2296 = vpack.c.b16 %v2272, %v2271
        %v2297 = vpack.c.b16 %v2274, %v2273
        %v2298 = vpack.c.b16 %v2276, %v2275
        %v2299 = vpack.c.b16 %v2278, %v2277
        %v2300 = vpack.c.b16 %v2280, %v2279
        %v2301 = vpack.c.b16 %v2282, %v2281
        %v2302 = vpack.c.b16 %v2284, %v2283
        %v2303 = vpack.c.b16 %v2286, %v2285
        %v2304 = vpack.c.b16 %v2288, %v2287
        %v2305 = vpack.c.b16 %v2290, %v2289
        %v2306 = vpack.c.b16 %v2292, %v2291
        %vm2321 = vcmask 785408
        %v2323 = vsel %vm2321, %v2235, 0
        %2325 = vmatprep.subr.bf16.mxu0 0
        %2326 = vmatpush1.bf16.msra.mxu0 %v2293
        %2327 = vmatprep.subr.bf16.mxu0 0
        %2328 = vmatpush1.bf16.msra.mxu0 %v2294
        %2329 = vmatprep.subr.bf16.mxu0 0
        %2330 = vmatpush1.bf16.msra.mxu0 %v2295
        %2331 = vmatprep.subr.bf16.mxu0 0
        %2332 = vmatpush1.bf16.msra.mxu0 %v2296
        %2333 = vmatprep.subr.bf16.mxu0 0
        %2334 = vmatpush1.bf16.msra.mxu0 %v2297
        %2335 = vmatprep.subr.bf16.mxu0 0
        %2336 = vmatpush1.bf16.msra.mxu0 %v2298
        %2337 = vmatprep.subr.bf16.mxu0 0
        %2338 = vmatpush1.bf16.msra.mxu0 %v2299
        %2339 = vmatprep.subr.bf16.mxu0 0
        %2340 = vmatpush1.bf16.msra.mxu0 %v2300
        %2341 = vmatprep.subr.bf16.mxu0 0
        %2342 = vmatpush1.bf16.msra.mxu0 %v2301
        %2343 = vmatprep.subr.bf16.mxu0 0
        %2344 = vmatpush1.bf16.msra.mxu0 %v2302
        %2345 = vmatprep.subr.bf16.mxu0 0
        %2346 = vmatpush1.bf16.msra.mxu0 %v2303
        %2347 = vmatprep.subr.bf16.mxu0 0
        %2348 = vmatpush1.bf16.msra.mxu0 %v2304
        %2349 = vmatprep.subr.bf16.mxu0 0
        %2350 = vmatpush1.bf16.msra.mxu0 %v2305
        %2351 = vmatprep.subr.bf16.mxu0 0
        %2352 = vmatpush1.bf16.msra.mxu0 %v2306
        %2353 = vmatprep.subr.bf16.mxu0 0
        %2354 = vmatpush1.bf16.msra.mxu0 0
        %2355 = vmatprep.subr.bf16.mxu0 0
        %2356 = vmatpush1.bf16.msra.mxu0 0
        %2357 = vmatprep.mubr.bf16.mxu0 %v2323
        %2358 = vmatmul.mubr.bf16.gmra.mrb[0].mxu0 %v2234
        %v2359 = vpop.f32.mrb[0].mxu0
        %v2360 = vadd.f32 %v2229, %v2359
        %v2361 = vpop.f32.mrb[0].mxu0
        %v2362 = vpop.f32.mrb[0].mxu0
        %v2363 = vpop.f32.mrb[0].mxu0
        %2364 = vdwg.mxu0
        %2365 = vst [vmem:[%s689] sm:$0xff] %v2360
        %s2366 = sand.u32 %s284, 1
        %s2367 = scalar_lea.sflag [#allocation5], %s2366
        %s2368 = sand.u32 %s284, 1
        %s2369 = smul.addr %s2368, 8
        %s2370 = scalar_lea.vmem [#allocation18], %s2369
        // Predicated region
        $region142: #{decoder_step.1} parent=100 // pred_check
          %p2371 = pneg %p294
        $region143: #{decoder_step.1} parent=100 // pred_check_branch
          %2373 = sbr.rel (%p2371) target = $region145
        $region144: #{decoder_step.1} parent=100 // pred_region
          %s2375 = ssub.s32 128, 128
          %2376 = vsyncadd %s2367, %s2375
          %s2377 = smul.addr %s35, 128
          %s2378 = scalar_lea.hbm %s11, %s2377
          %s2380 = sshll.u32 %s2370, 4
          %s2381 = int_to_ptr.vmem [resolvable:$true] %s2380
          %2383 = dma.vmem_to_hbm [thread:$0]  %s2381, 128, %s2378, %s2367
        $region145: #{decoder_step.1} parent=100 // pred_fallthru
          _
        // Predicated region
        $region146: #{decoder_step.1} parent=100 // pred_check
          %p2384 = pneg %p315
        $region147: #{decoder_step.1} parent=100 // pred_check_branch
          %2386 = sbr.rel (%p2384) target = $region149
        $region148: #{decoder_step.1} parent=100 // pred_region
          %s2388 = ssub.s32 256, 256
          %2389 = vsyncadd [#allocation20], %s2388
          %s2390 = sshll.u32 [#allocation19], 4
          %s2391 = int_to_ptr.vmem [resolvable:$true] %s2390
          %2396 = dma.vmem_to_hbm [thread:$0]  %s2391, 256, %s12, [#allocation20], 128, 128, 8
        $region149: #{decoder_step.1} parent=100 // pred_fallthru
          _
        // Predicated region
        $region150: #{decoder_step.1} parent=100 // pred_check
          %p2397 = pneg %p315
        $region151: #{decoder_step.1} parent=100 // pred_check_branch
          %2399 = sbr.rel (%p2397) target = $region153
        $region152: #{decoder_step.1} parent=100 // pred_region
          %2400 = dma.done [#allocation20], 256
        $region153: #{decoder_step.1} parent=100 // pred_fallthru
          _
      $region101: #{decoder_step.1} parent=5 // pred_fallthru
        _
      %p2401 = scmp.le.s32.totalorder 2, %s30
      // Predicated region
      $region154: #{decoder_step.1} parent=5 // pred_check
        %p2402 = pneg %p2401
      $region155: #{decoder_step.1} parent=5 // pred_check_branch
        %2404 = sbr.rel (%p2402) target = $region157
      $region156: #{decoder_step.1} parent=5 // pred_region
        %s2405 = ssub.s32 %s30, 2
        // Predicated region
        $region158: #{decoder_step.1} parent=156 // pred_check
          %p2406 = pneg %p300
        $region159: #{decoder_step.1} parent=156 // pred_check_branch
          %2408 = sbr.rel (%p2406) target = $region161
        $region160: #{decoder_step.1} parent=156 // pred_region
          %s2409 = sand.u32 %s285, 1
          %s2410 = scalar_lea.sflag [#allocation5], %s2409
          %s2411 = sand.u32 %s285, 1
          %s2412 = smul.addr %s2411, 8
          %s2413 = scalar_lea.vmem [#allocation18], %s2412
          %2414 = dma.done %s2410, 128
        $region161: #{decoder_step.1} parent=156 // pred_fallthru
          _
      $region157: #{decoder_step.1} parent=5 // pred_fallthru
        _
    $region6: #{decoder_step.1} parent=1 // loop_footer
      %s34 = sadd.s32 1, %s30
    $region7: #{decoder_step.1} parent=1 // loop_footer_branch
      %29 = sbr.rel target = $region3
    $region8: #{decoder_step.1} parent=1 // loop_exit
      _
    %2415 = vsyncpa [#allocation4], 1
    %s2416 = scalar_lea.sflag [#allocation4], 1
    %2417 = vsyncpa %s2416, 1
    %2418 = vsyncpa [#allocation7], 1
    %2419 = vsyncpa [#allocation10], 1
    %2420 = vsyncpa [#allocation13], 1
    %2421 = vsyncpa [#allocation17], 1
    %s2422 = scalar_lea.sflag [#allocation17], 1
    %2423 = vsyncpa %s2422, 1
    %2424 = vsyncpa [#allocation5], 1
    %s2425 = scalar_lea.sflag [#allocation5], 1
    %2426 = vsyncpa %s2425, 1
    %2427 = vsyncpa [#allocation20], 1

</llo_original>
